<compile_context>
chip_gen: v7x
topology: tpu7x:2x2x1
jax: 0.10.0
libtpu: 0.0.40
codegen_flags: <defaults>
</compile_context>

<pallas_src>
import functools

import jax
import jax.numpy as jnp
from jax import lax
from jax.experimental import pallas as pl
from jax.experimental.pallas import tpu as pltpu


# ---------------------------------------------------------------------------
# Hardware-aware tiling choices.
# ---------------------------------------------------------------------------
def _mxu_lane_target():
    """Target GEMM N width: 128 lanes fill the v5e MXU, 256 fill v6e/v7x."""
    try:
        kind = jax.devices()[0].device_kind.lower()
    except Exception:
        return 256
    if "v5e" in kind or "v5 lite" in kind or "v5lite" in kind:
        return 128
    return 256


def _pick_tw(W, cout, lane_target):
    """Largest divisor of W with TW*cout <= lane_target (at least 1)."""
    cap = max(1, lane_target // max(1, cout))
    tw = 1
    for cand in range(1, min(W, cap) + 1):
        if W % cand == 0:
            tw = cand
    return tw


@functools.lru_cache(maxsize=None)
def _pipeline_mode_supported():
    """Probe whether BlockSpec(pipeline_mode=pl.Buffered(1)) lowers/runs here."""
    if not hasattr(pl, "Buffered"):
        return False

    def _copy(x_ref, o_ref):
        o_ref[...] = x_ref[...]

    try:
        spec = pl.BlockSpec((8, 128), lambda i: (0, 0),
                            pipeline_mode=pl.Buffered(1))
        x = jnp.zeros((8, 128), jnp.float32)
        out = pl.pallas_call(
            _copy,
            out_shape=jax.ShapeDtypeStruct((8, 128), jnp.float32),
            grid=(1,),
            in_specs=[spec],
            out_specs=pl.BlockSpec((8, 128), lambda i: (0, 0)),
        )(x)
        jax.block_until_ready(out)
        return True
    except Exception:   # unsupported on this jax/libtpu -> default buffering
        return False


# ---------------------------------------------------------------------------
# Pallas kernel: fused double conv (3x3, padding=1) + folded-BN affine + ReLU.
#   x_ref : (1, H+2, (W+2)*C1)      bf16  pre-padded, row-flattened NHWC input
#   w1_ref: (3, (TW1+2)*C1, TW1*C2) bf16  banded conv1 slabs (one per dy tap;
#                                         translation invariant -> shared by
#                                         every width tile)
#   s1/b1 : (1, TW1*C2)             f32   folded BN scale/bias (one width tile)
#   w2_ref: (3, (TW2+2)*C2, TW2*C3) bf16
#   s2/b2 : (1, TW2*C3)             f32
#   o_ref : (1, H, W*C3)            bf16  lane-dense output tile
#   y_scr : (H+2, (W+2)*C2)         bf16  VMEM scratch: padded conv1 activation
# ---------------------------------------------------------------------------
def _double_conv_kernel(x_ref, w1_ref, s1_ref, b1_ref, w2_ref, s2_ref, b2_ref,
                        o_ref, y_scr, *, H, W, C1, C2, C3, TW1, TW2):
    nt1, nt2 = W // TW1, W // TW2
    K1, K2 = (TW1 + 2) * C1, (TW2 + 2) * C2
    N1, N2 = TW1 * C2, TW2 * C3

    def banded_conv(load_tile, w_ref, nt, N):
        # dy OUTER so every width tile reuses the same weight slab back-to-back
        # (RHS reuse on the MXU); all loops are static unrolls.
        xs = [load_tile(t) for t in range(nt)]                  # (H+2, K) bf16
        accs = [jnp.zeros((H, N), jnp.float32) for _ in range(nt)]
        for dy in range(3):
            w_dy = w_ref[dy]
            for t in range(nt):
                accs[t] = accs[t] + jnp.dot(xs[t][dy:dy + H, :], w_dy,
                                            preferred_element_type=jnp.float32)
        return accs

    # ---- conv1 + BN + ReLU -> padded bf16 scratch (never leaves VMEM) ------
    acc1 = banded_conv(lambda t: x_ref[0, :, t * TW1 * C1: t * TW1 * C1 + K1],
                       w1_ref, nt1, N1)
    # Halo of the scratch must be zero.  Re-zeroed every grid step: the scratch
    # persists across steps/cores, so we never rely on "step 0 ran on this core".
    y_scr[...] = jnp.zeros_like(y_scr)
    for t in range(nt1):
        y_t = jnp.maximum(acc1[t] * s1_ref[...] + b1_ref[...], 0.0)   # f32 VPU
        col = (t * TW1 + 1) * C2
        y_scr[1:H + 1, col: col + N1] = y_t.astype(y_scr.dtype)

    # ---- conv2 + BN + ReLU -> lane-dense bf16 output ------------------------
    acc2 = banded_conv(lambda t: y_scr[:, t * TW2 * C2: t * TW2 * C2 + K2],
                       w2_ref, nt2, N2)
    for t in range(nt2):
        z_t = jnp.maximum(acc2[t] * s2_ref[...] + b2_ref[...], 0.0)
        o_ref[0, :, t * N2: (t + 1) * N2] = z_t.astype(o_ref.dtype)


def double_conv_fused(x_flat, kp, *, H, W, C1):
    """x_flat: (B, H+2, (W+2)*C1) bf16 pre-padded row-flattened NHWC.
    Returns (B, H, W*C3) bf16."""
    B = x_flat.shape[0]
    Wp = W + 2
    assert x_flat.shape == (B, H + 2, Wp * C1), x_flat.shape

    # Static tile geometry recovered from the (static) prepared-weight shapes.
    K1 = kp["w1"].shape[1]
    TW1 = K1 // C1 - 2
    C2 = kp["w1"].shape[2] // TW1
    K2 = kp["w2"].shape[1]
    TW2 = K2 // C2 - 2
    C3 = kp["w2"].shape[2] // TW2
    N1, N2 = TW1 * C2, TW2 * C3
    assert W % TW1 == 0 and W % TW2 == 0, (W, TW1, TW2)

    kernel = functools.partial(_double_conv_kernel, H=H, W=W, C1=C1, C2=C2,
                               C3=C3, TW1=TW1, TW2=TW2)

    # Constant-index operands are DMA'd once; single-buffer them if supported.
    buf_kw = ({"pipeline_mode": pl.Buffered(1)}
              if _pipeline_mode_supported() else {})
    wbuf = 1 if buf_kw else 2

    def const_spec(shape):
        rank = len(shape)
        return pl.BlockSpec(shape, lambda *_: (0,) * rank, **buf_kw)

    # Explicit VMEM budget: double-buffered x/o blocks + once-resident weights
    # + padded intermediate scratch, with headroom for in-kernel temporaries.
    # Capped below v7x's 64 MiB physical VMEM.
    est = (2 * (H + 2) * Wp * C1 * 2          # x block  (bf16, 2 buffers)
           + 2 * H * W * C3 * 2               # o block  (bf16, 2 buffers)
           + wbuf * 3 * K1 * N1 * 2           # w1 slabs (bf16)
           + wbuf * 3 * K2 * N2 * 2           # w2 slabs (bf16)
           + wbuf * 2 * (N1 + N2) * 4         # scale/bias (f32)
           + (H + 2) * Wp * C2 * 2)           # intermediate scratch (bf16)
    vmem_limit = int(min(max(4 * est, 16 << 20), 48 << 20))

    # TODO(synk): add a second "parallel" grid axis (row bands over H with a
    # 2-row conv1 halo) so both v7x TensorCores stay busy when B is odd or 1.
    # TODO(synk): for large B, stack Bt images per grid step (M = Bt*(H+2)) to
    # amortize MXU RHS loads beyond the dy-outer slab reuse implemented here.
    return pl.pallas_call(
        kernel,
        out_shape=jax.ShapeDtypeStruct((B, H, W * C3), jnp.bfloat16),
        grid=(B,),
        in_specs=[
            pl.BlockSpec((1, H + 2, Wp * C1), lambda b: (b, 0, 0)),
            const_spec((3, K1, N1)),
            const_spec((1, N1)),
            const_spec((1, N1)),
            const_spec((3, K2, N2)),
            const_spec((1, N2)),
            const_spec((1, N2)),
        ],
        out_specs=pl.BlockSpec((1, H, W * C3), lambda b: (b, 0, 0)),
        scratch_shapes=[pltpu.VMEM((H + 2, Wp * C2), jnp.bfloat16)],
        compiler_params=pltpu.CompilerParams(
            dimension_semantics=("parallel",),
            vmem_limit_bytes=vmem_limit),
    )(x_flat, kp["w1"], kp["s1"], kp["b1"], kp["w2"], kp["s2"], kp["b2"])


# ---------------------------------------------------------------------------
# Parameter setup.  BatchNorm is eval-mode, folded (with the conv bias) into a
# per-channel scale/bias.
# TODO(synk): training-mode BatchNorm (batch statistics) is not implemented.
# ---------------------------------------------------------------------------
def _fold_bn(conv_b, gamma, beta, mean, var, eps=1e-5):
    scale = gamma / jnp.sqrt(var + eps)
    bias = beta + (conv_b - mean) * scale
    return scale[None, :], bias[None, :]


def make_params(in_ch, out_ch, key):
    ks = jax.random.split(key, 10)
    w1 = jax.random.normal(ks[0], (3, 3, in_ch, out_ch), jnp.float32) * 0.1
    b1 = jax.random.normal(ks[1], (out_ch,), jnp.float32) * 0.1
    g1 = 0.5 + jax.random.uniform(ks[2], (out_ch,), jnp.float32)
    be1 = jax.random.normal(ks[3], (out_ch,), jnp.float32) * 0.1
    m1 = jax.random.normal(ks[4], (out_ch,), jnp.float32) * 0.1
    v1 = 0.5 + jax.random.uniform(ks[5], (out_ch,), jnp.float32)

    w2 = jax.random.normal(ks[6], (3, 3, out_ch, out_ch), jnp.float32) * 0.1
    b2 = jax.random.normal(ks[7], (out_ch,), jnp.float32) * 0.1
    g2 = 0.5 + jax.random.uniform(ks[8], (out_ch,), jnp.float32)
    be2 = jax.random.normal(ks[9], (out_ch,), jnp.float32) * 0.1
    m2 = jnp.zeros((out_ch,), jnp.float32)
    v2 = jnp.ones((out_ch,), jnp.float32)

    s1, bb1 = _fold_bn(b1, g1, be1, m1, v1)
    s2, bb2 = _fold_bn(b2, g2, be2, m2, v2)
    return dict(w1=w1, scale1=s1, bias1=bb1, w2=w2, scale2=s2, bias2=bb2)


def prepare_kernel_params(params, W, lane_target=None):
    """One-time prep: width-tiled banded bf16 slabs + tile-tiled f32 scale/bias."""
    if lane_target is None:
        lane_target = _mxu_lane_target()
    tw1 = _pick_tw(W, params["w1"].shape[3], lane_target)
    tw2 = _pick_tw(W, params["w2"].shape[3], lane_target)

    def banded(w_hwio, tw):
        _, _, cin, cout = w_hwio.shape
        twp = tw + 2
        slabs = []
        for dy in range(3):
            big = jnp.zeros((twp * cin, tw * cout), jnp.float32)
            for dx in range(3):
                # e[i, j] = 1 iff i == j + dx  ->  kron places w[dy, dx] at
                # block (i=j+dx, j): output col j reads padded input col j+dx.
                e = jnp.eye(twp, tw, k=-dx, dtype=jnp.float32)
                big = big + jnp.kron(e, w_hwio[dy, dx])
            slabs.append(big)
        # TODO(synk): optionally pad K=(tw+2)*cin up to a multiple of 256 to
        # remove the MXU K-tile padding on v6e/v7x.
        return jnp.stack(slabs).astype(jnp.bfloat16)   # (3, (tw+2)*cin, tw*cout)

    def tile_vec(v, tw):                               # (1, C) -> (1, tw*C) f32
        return jnp.tile(v[0], tw)[None, :].astype(jnp.float32)

    return dict(
        w1=banded(params["w1"], tw1),
        s1=tile_vec(params["scale1"], tw1), b1=tile_vec(params["bias1"], tw1),
        w2=banded(params["w2"], tw2),
        s2=tile_vec(params["scale2"], tw2), b2=tile_vec(params["bias2"], tw2),
    )


# ---------------------------------------------------------------------------
# `up.forward` equivalent.  Inputs/outputs are NCHW f32 to match PyTorch.
# ---------------------------------------------------------------------------
def up_forward(x1, x2, kparams):
    # bf16 BEFORE the data-movement glue (halves its HBM traffic; these ops do
    # no arithmetic, so numerics are unchanged).
    x1 = x1.astype(jnp.bfloat16)
    x2 = x2.astype(jnp.bfloat16)

    # nn.Upsample(scale_factor=2), default mode='nearest'.
    # TODO(synk): upsample / F.pad / channel-concat / transpose glue stays in
    # XLA; fusing it into the kernel would need in-kernel channel interleaving.
    x1u = jnp.repeat(jnp.repeat(x1, 2, axis=2), 2, axis=3)

    dif_h = x1u.shape[2] - x2.shape[2]
    dif_w = x1u.shape[3] - x2.shape[3]
    k = dif_h // 2
    l = dif_w // 2
    # F.pad(x2, (k, dif_h-k, l, dif_w-l)) pads the LAST dim (W) by (k, dif_h-k)
    # and dim 2 (H) by (l, dif_w-l) — the original module's quirk (height diff
    # applied to W and vice versa), reproduced exactly.
    x2p = jnp.pad(x2, ((0, 0), (0, 0), (l, dif_w - l), (k, dif_h - k)))

    x = jnp.concatenate([x1u, x2p], axis=1)                  # NCHW channel concat
    B, C1, H, W = x.shape
    x = jnp.transpose(x, (0, 2, 3, 1))                       # NHWC
    x = jnp.pad(x, ((0, 0), (1, 1), (1, 1), (0, 0)))         # conv1 halo (pre-pad)
    x = x.reshape(B, H + 2, (W + 2) * C1)                    # lane-dense rows

    y = double_conv_fused(x, kparams, H=H, W=W, C1=C1)       # (B, H, W*C3) bf16
    C3 = y.shape[2] // W
    y = y.reshape(B, H, W, C3)
    # Transpose in bf16 (half traffic), then restore the module's f32 dtype.
    return jnp.transpose(y, (0, 3, 1, 2)).astype(jnp.float32)


# Pure-JAX reference.  matmul_dtype=bf16 mirrors the kernel's MXU precision
# (bf16 operands, f32 accumulation, f32 BN/ReLU) for a tight correctness check.
def up_forward_ref(x1, x2, params, matmul_dtype=jnp.bfloat16):
    x1u = jnp.repeat(jnp.repeat(x1, 2, axis=2), 2, axis=3)
    dif_h = x1u.shape[2] - x2.shape[2]
    dif_w = x1u.shape[3] - x2.shape[3]
    k = dif_h // 2
    l = dif_w // 2
    x2p = jnp.pad(x2, ((0, 0), (0, 0), (l, dif_w - l), (k, dif_h - k)))
    x = jnp.concatenate([x1u, x2p], axis=1)
    x = jnp.transpose(x, (0, 2, 3, 1))

    def conv_bn_relu(x, w, scale, bias):
        y = lax.conv_general_dilated(
            x.astype(matmul_dtype), w.astype(matmul_dtype),
            window_strides=(1, 1), padding="SAME",
            dimension_numbers=("NHWC", "HWIO", "NHWC"),
            preferred_element_type=jnp.float32)
        return jnp.maximum(y * scale[0] + bias[0], 0.0)

    y = conv_bn_relu(x, params["w1"], params["scale1"], params["bias1"])
    y = conv_bn_relu(y, params["w2"], params["scale2"], params["bias2"])
    return jnp.transpose(y, (0, 3, 1, 2))


if __name__ == "__main__":
    key = jax.random.PRNGKey(0)
    k1, k2, kp = jax.random.split(key, 3)

    # x1: low-res feature map (NCHW), x2: skip connection (NCHW)
    B, C1_in, C2_in = 2, 16, 16
    x1 = jax.random.normal(k1, (B, C1_in, 8, 8), jnp.float32)
    x2 = jax.random.normal(k2, (B, C2_in, 16, 16), jnp.float32)

    in_ch, out_ch = C1_in + C2_in, 16
    params = make_params(in_ch, out_ch, kp)

    H_out, W_out = 2 * x1.shape[2], 2 * x1.shape[3]
    kparams = prepare_kernel_params(params, W_out)           # one-time weight prep

    fwd = jax.jit(up_forward)
    out = jax.block_until_ready(fwd(x1, x2, kparams))
    ref = jax.block_until_ready(up_forward_ref(x1, x2, params))

    assert out.shape == (B, out_ch, H_out, W_out), out.shape
    assert jnp.allclose(out, ref, atol=2e-2, rtol=2e-2), float(jnp.abs(out - ref).max())
    print("KERNEL_OK")
</pallas_src>

<mosaic_0001>
module attributes {stable_mosaic.version = 11 : i64} {
  func.func @_double_conv_kernel(%arg0: i32, %arg1: memref<1x18x576xbf16, #tpu.memory_space<vmem>>, %arg2: memref<3x576x256xbf16, #tpu.memory_space<vmem>>, %arg3: memref<1x256xf32, #tpu.memory_space<vmem>>, %arg4: memref<1x256xf32, #tpu.memory_space<vmem>>, %arg5: memref<3x288x256xbf16, #tpu.memory_space<vmem>>, %arg6: memref<1x256xf32, #tpu.memory_space<vmem>>, %arg7: memref<1x256xf32, #tpu.memory_space<vmem>>, %arg8: memref<1x16x256xbf16, #tpu.memory_space<vmem>>, %arg9: memref<18x288xbf16, #tpu.memory_space<vmem>>) attributes {dimension_semantics = [#tpu.dimension_semantics<parallel>], iteration_bounds = array<i64: 2>, scalar_prefetch = 0 : i64, scratch_operands = 1 : i64, tpu.core_type = #tpu.core_type<tc>, window_params = [{transform_indices = @transform_0, window_bounds = array<i64: 1, 18, 576>}, {pipeline_mode = #tpu.pipeline_mode<synchronous>, transform_indices = @transform_1, window_bounds = array<i64: 3, 576, 256>}, {pipeline_mode = #tpu.pipeline_mode<synchronous>, transform_indices = @transform_2, window_bounds = array<i64: 1, 256>}, {pipeline_mode = #tpu.pipeline_mode<synchronous>, transform_indices = @transform_3, window_bounds = array<i64: 1, 256>}, {pipeline_mode = #tpu.pipeline_mode<synchronous>, transform_indices = @transform_4, window_bounds = array<i64: 3, 288, 256>}, {pipeline_mode = #tpu.pipeline_mode<synchronous>, transform_indices = @transform_5, window_bounds = array<i64: 1, 256>}, {pipeline_mode = #tpu.pipeline_mode<synchronous>, transform_indices = @transform_6, window_bounds = array<i64: 1, 256>}, {transform_indices = @transform_7, window_bounds = array<i64: 1, 16, 256>}]} {
    %c0 = arith.constant 0 : index
    %c0_0 = arith.constant 0 : index
    %c0_1 = arith.constant 0 : index
    %0 = vector.load %arg1[%c0, %c0_0, %c0_1] : memref<1x18x576xbf16, #tpu.memory_space<vmem>>, vector<1x18x576xbf16>
    %1 = vector.shape_cast %0 : vector<1x18x576xbf16> to vector<18x576xbf16>
    %cst = arith.constant 0.000000e+00 : f32
    %2 = vector.broadcast %cst : f32 to vector<16x256xf32>
    %c0_2 = arith.constant 0 : index
    %c0_3 = arith.constant 0 : index
    %c0_4 = arith.constant 0 : index
    %3 = vector.load %arg2[%c0_2, %c0_3, %c0_4] : memref<3x576x256xbf16, #tpu.memory_space<vmem>>, vector<1x576x256xbf16>
    %4 = vector.shape_cast %3 : vector<1x576x256xbf16> to vector<576x256xbf16>
    %5 = vector.extract_strided_slice %1 {offsets = [0, 0], sizes = [16, 576], strides = [1, 1]} : vector<18x576xbf16> to vector<16x576xbf16>
    %cst_5 = arith.constant dense<0.000000e+00> : vector<16x256xf32>
    %6 = tpu.matmul %5, %4, %cst_5 {dimension_numbers = #tpu.dot_dimension_numbers<[1], [0], [0], [1], [0, 0, 1, 1], [], []>} : vector<16x576xbf16>, vector<576x256xbf16>, vector<16x256xf32> -> vector<16x256xf32>
    %7 = arith.addf %2, %6 : vector<16x256xf32>
    %c1 = arith.constant 1 : index
    %c0_6 = arith.constant 0 : index
    %c0_7 = arith.constant 0 : index
    %8 = vector.load %arg2[%c1, %c0_6, %c0_7] : memref<3x576x256xbf16, #tpu.memory_space<vmem>>, vector<1x576x256xbf16>
    %9 = vector.shape_cast %8 : vector<1x576x256xbf16> to vector<576x256xbf16>
    %10 = vector.extract_strided_slice %1 {offsets = [1, 0], sizes = [16, 576], strides = [1, 1]} : vector<18x576xbf16> to vector<16x576xbf16>
    %cst_8 = arith.constant dense<0.000000e+00> : vector<16x256xf32>
    %11 = tpu.matmul %10, %9, %cst_8 {dimension_numbers = #tpu.dot_dimension_numbers<[1], [0], [0], [1], [0, 0, 1, 1], [], []>} : vector<16x576xbf16>, vector<576x256xbf16>, vector<16x256xf32> -> vector<16x256xf32>
    %12 = arith.addf %7, %11 : vector<16x256xf32>
    %c2 = arith.constant 2 : index
    %c0_9 = arith.constant 0 : index
    %c0_10 = arith.constant 0 : index
    %13 = vector.load %arg2[%c2, %c0_9, %c0_10] : memref<3x576x256xbf16, #tpu.memory_space<vmem>>, vector<1x576x256xbf16>
    %14 = vector.shape_cast %13 : vector<1x576x256xbf16> to vector<576x256xbf16>
    %15 = vector.extract_strided_slice %1 {offsets = [2, 0], sizes = [16, 576], strides = [1, 1]} : vector<18x576xbf16> to vector<16x576xbf16>
    %cst_11 = arith.constant dense<0.000000e+00> : vector<16x256xf32>
    %16 = tpu.matmul %15, %14, %cst_11 {dimension_numbers = #tpu.dot_dimension_numbers<[1], [0], [0], [1], [0, 0, 1, 1], [], []>} : vector<16x576xbf16>, vector<576x256xbf16>, vector<16x256xf32> -> vector<16x256xf32>
    %17 = arith.addf %12, %16 : vector<16x256xf32>
    %cst_12 = arith.constant 0.000000e+00 : bf16
    %18 = vector.broadcast %cst_12 : bf16 to vector<18x288xbf16>
    %c0_13 = arith.constant 0 : index
    %c0_14 = arith.constant 0 : index
    %19 = vector.load %arg9[%c0_13, %c0_14] : memref<18x288xbf16, #tpu.memory_space<vmem>>, vector<18x288xbf16>
    tpu.vector_store %arg9[%c0_13, %c0_14], %18 {strides = array<i32>} : memref<18x288xbf16, #tpu.memory_space<vmem>>, vector<18x288xbf16>,
    %c0_15 = arith.constant 0 : index
    %c0_16 = arith.constant 0 : index
    %20 = vector.load %arg3[%c0_15, %c0_16] : memref<1x256xf32, #tpu.memory_space<vmem>>, vector<1x256xf32>
    %21 = vector.broadcast %20 : vector<1x256xf32> to vector<16x256xf32>
    %22 = arith.mulf %17, %21 : vector<16x256xf32>
    %c0_17 = arith.constant 0 : index
    %c0_18 = arith.constant 0 : index
    %23 = vector.load %arg4[%c0_17, %c0_18] : memref<1x256xf32, #tpu.memory_space<vmem>>, vector<1x256xf32>
    %24 = vector.broadcast %23 : vector<1x256xf32> to vector<16x256xf32>
    %25 = arith.addf %22, %24 : vector<16x256xf32>
    %cst_19 = arith.constant 0.000000e+00 : f32
    %26 = vector.broadcast %cst_19 : f32 to vector<16x256xf32>
    %27 = arith.maximumf %25, %26 : vector<16x256xf32>
    %28 = arith.truncf %27 : vector<16x256xf32> to vector<16x256xbf16>
    %c1_20 = arith.constant 1 : index
    %c16 = arith.constant 16 : index
    %29 = vector.load %arg9[%c1_20, %c16] : memref<18x288xbf16, #tpu.memory_space<vmem>>, vector<16x256xbf16>
    tpu.vector_store %arg9[%c1_20, %c16], %28 {strides = array<i32>} : memref<18x288xbf16, #tpu.memory_space<vmem>>, vector<16x256xbf16>,
    %c0_21 = arith.constant 0 : index
    %c0_22 = arith.constant 0 : index
    %30 = vector.load %arg9[%c0_21, %c0_22] : memref<18x288xbf16, #tpu.memory_space<vmem>>, vector<18x288xbf16>
    %cst_23 = arith.constant 0.000000e+00 : f32
    %31 = vector.broadcast %cst_23 : f32 to vector<16x256xf32>
    %c0_24 = arith.constant 0 : index
    %c0_25 = arith.constant 0 : index
    %c0_26 = arith.constant 0 : index
    %32 = vector.load %arg5[%c0_24, %c0_25, %c0_26] : memref<3x288x256xbf16, #tpu.memory_space<vmem>>, vector<1x288x256xbf16>
    %33 = vector.shape_cast %32 : vector<1x288x256xbf16> to vector<288x256xbf16>
    %34 = vector.extract_strided_slice %30 {offsets = [0, 0], sizes = [16, 288], strides = [1, 1]} : vector<18x288xbf16> to vector<16x288xbf16>
    %cst_27 = arith.constant dense<0.000000e+00> : vector<16x256xf32>
    %35 = tpu.matmul %34, %33, %cst_27 {dimension_numbers = #tpu.dot_dimension_numbers<[1], [0], [0], [1], [0, 0, 1, 1], [], []>} : vector<16x288xbf16>, vector<288x256xbf16>, vector<16x256xf32> -> vector<16x256xf32>
    %36 = arith.addf %31, %35 : vector<16x256xf32>
    %c1_28 = arith.constant 1 : index
    %c0_29 = arith.constant 0 : index
    %c0_30 = arith.constant 0 : index
    %37 = vector.load %arg5[%c1_28, %c0_29, %c0_30] : memref<3x288x256xbf16, #tpu.memory_space<vmem>>, vector<1x288x256xbf16>
    %38 = vector.shape_cast %37 : vector<1x288x256xbf16> to vector<288x256xbf16>
    %39 = vector.extract_strided_slice %30 {offsets = [1, 0], sizes = [16, 288], strides = [1, 1]} : vector<18x288xbf16> to vector<16x288xbf16>
    %cst_31 = arith.constant dense<0.000000e+00> : vector<16x256xf32>
    %40 = tpu.matmul %39, %38, %cst_31 {dimension_numbers = #tpu.dot_dimension_numbers<[1], [0], [0], [1], [0, 0, 1, 1], [], []>} : vector<16x288xbf16>, vector<288x256xbf16>, vector<16x256xf32> -> vector<16x256xf32>
    %41 = arith.addf %36, %40 : vector<16x256xf32>
    %c2_32 = arith.constant 2 : index
    %c0_33 = arith.constant 0 : index
    %c0_34 = arith.constant 0 : index
    %42 = vector.load %arg5[%c2_32, %c0_33, %c0_34] : memref<3x288x256xbf16, #tpu.memory_space<vmem>>, vector<1x288x256xbf16>
    %43 = vector.shape_cast %42 : vector<1x288x256xbf16> to vector<288x256xbf16>
    %44 = vector.extract_strided_slice %30 {offsets = [2, 0], sizes = [16, 288], strides = [1, 1]} : vector<18x288xbf16> to vector<16x288xbf16>
    %cst_35 = arith.constant dense<0.000000e+00> : vector<16x256xf32>
    %45 = tpu.matmul %44, %43, %cst_35 {dimension_numbers = #tpu.dot_dimension_numbers<[1], [0], [0], [1], [0, 0, 1, 1], [], []>} : vector<16x288xbf16>, vector<288x256xbf16>, vector<16x256xf32> -> vector<16x256xf32>
    %46 = arith.addf %41, %45 : vector<16x256xf32>
    %c0_36 = arith.constant 0 : index
    %c0_37 = arith.constant 0 : index
    %47 = vector.load %arg6[%c0_36, %c0_37] : memref<1x256xf32, #tpu.memory_space<vmem>>, vector<1x256xf32>
    %48 = vector.broadcast %47 : vector<1x256xf32> to vector<16x256xf32>
    %49 = arith.mulf %46, %48 : vector<16x256xf32>
    %c0_38 = arith.constant 0 : index
    %c0_39 = arith.constant 0 : index
    %50 = vector.load %arg7[%c0_38, %c0_39] : memref<1x256xf32, #tpu.memory_space<vmem>>, vector<1x256xf32>
    %51 = vector.broadcast %50 : vector<1x256xf32> to vector<16x256xf32>
    %52 = arith.addf %49, %51 : vector<16x256xf32>
    %cst_40 = arith.constant 0.000000e+00 : f32
    %53 = vector.broadcast %cst_40 : f32 to vector<16x256xf32>
    %54 = arith.maximumf %52, %53 : vector<16x256xf32>
    %55 = arith.truncf %54 : vector<16x256xf32> to vector<16x256xbf16>
    %c0_41 = arith.constant 0 : index
    %c0_42 = arith.constant 0 : index
    %c0_43 = arith.constant 0 : index
    %56 = vector.load %arg8[%c0_41, %c0_42, %c0_43] : memref<1x16x256xbf16, #tpu.memory_space<vmem>>, vector<1x16x256xbf16>
    %57 = vector.shape_cast %56 : vector<1x16x256xbf16> to vector<16x256xbf16>
    %58 = vector.shape_cast %55 : vector<16x256xbf16> to vector<1x16x256xbf16>
    tpu.vector_store %arg8[%c0_41, %c0_42, %c0_43], %58 {strides = array<i32>} : memref<1x16x256xbf16, #tpu.memory_space<vmem>>, vector<1x16x256xbf16>,
    return
  }
  func.func @transform_0(%arg0: i32) -> (i32, i32, i32) {
    %c0_i32 = arith.constant 0 : i32
    %c0_i32_0 = arith.constant 0 : i32
    %c0_i32_1 = arith.constant 0 : i32
    return %arg0, %c0_i32, %c0_i32_0 : i32, i32, i32
  }
  func.func @transform_1(%arg0: i32) -> (i32, i32, i32) {
    %c0_i32 = arith.constant 0 : i32
    %c0_i32_0 = arith.constant 0 : i32
    %c0_i32_1 = arith.constant 0 : i32
    %c0_i32_2 = arith.constant 0 : i32
    return %c0_i32, %c0_i32_0, %c0_i32_1 : i32, i32, i32
  }
  func.func @transform_2(%arg0: i32) -> (i32, i32) {
    %c0_i32 = arith.constant 0 : i32
    %c0_i32_0 = arith.constant 0 : i32
    %c0_i32_1 = arith.constant 0 : i32
    return %c0_i32, %c0_i32_0 : i32, i32
  }
  func.func @transform_3(%arg0: i32) -> (i32, i32) {
    %c0_i32 = arith.constant 0 : i32
    %c0_i32_0 = arith.constant 0 : i32
    %c0_i32_1 = arith.constant 0 : i32
    return %c0_i32, %c0_i32_0 : i32, i32
  }
  func.func @transform_4(%arg0: i32) -> (i32, i32, i32) {
    %c0_i32 = arith.constant 0 : i32
    %c0_i32_0 = arith.constant 0 : i32
    %c0_i32_1 = arith.constant 0 : i32
    %c0_i32_2 = arith.constant 0 : i32
    return %c0_i32, %c0_i32_0, %c0_i32_1 : i32, i32, i32
  }
  func.func @transform_5(%arg0: i32) -> (i32, i32) {
    %c0_i32 = arith.constant 0 : i32
    %c0_i32_0 = arith.constant 0 : i32
    %c0_i32_1 = arith.constant 0 : i32
    return %c0_i32, %c0_i32_0 : i32, i32
  }
  func.func @transform_6(%arg0: i32) -> (i32, i32) {
    %c0_i32 = arith.constant 0 : i32
    %c0_i32_0 = arith.constant 0 : i32
    %c0_i32_1 = arith.constant 0 : i32
    return %c0_i32, %c0_i32_0 : i32, i32
  }
  func.func @transform_7(%arg0: i32) -> (i32, i32, i32) {
    %c0_i32 = arith.constant 0 : i32
    %c0_i32_0 = arith.constant 0 : i32
    %c0_i32_1 = arith.constant 0 : i32
    return %arg0, %c0_i32, %c0_i32_0 : i32, i32, i32
  }
}

</mosaic_0001>

<llo_original>
// kernel: up_forward.1
$region0: #{up_forward.1}
  #allocation0 [shape = 'u32[]', space=smem, size = 0x4, offset = 0x4, fixed_abs, tag = 'smem constant byte address 0x4 - core index']
  #allocation1 [shape = 'u32[144,128]{1,0:T(1,128)}', space=vmem, size = 0x12000, scoped, tag = 'internal scratch']
  #allocation2 [shape = 'bf16[18,288]{1,0:T(8,128)(2,1)}', space=vmem, size = 0x4800, scoped, tag = 'scratch operand']
  %s0 = inlined_call_operand.vmem [shape: bf16[2,18,576], index: 0, kind: input, shape index: {}]
  %s1 = inlined_call_operand.vmem [shape: bf16[3,576,256], index: 1, kind: input, shape index: {}]
  %s2 = inlined_call_operand.vmem [shape: f32[1,256], index: 2, kind: input, shape index: {}]
  %s3 = inlined_call_operand.vmem [shape: f32[1,256], index: 3, kind: input, shape index: {}]
  %s4 = inlined_call_operand.vmem [shape: bf16[3,288,256], index: 4, kind: input, shape index: {}]
  %s5 = inlined_call_operand.vmem [shape: f32[1,256], index: 5, kind: input, shape index: {}]
  %s6 = inlined_call_operand.vmem [shape: f32[1,256], index: 6, kind: input, shape index: {}]
  %s7 = inlined_call_operand.vmem [shape: bf16[2,16,256], index: 7, kind: output, shape index: {}]
  %s8 = sld [smem:[#allocation0]]
  $region61: #{up_forward.1} parent=0
    _
  %s10 = ssub.s32 1, %s8
  %s11 = scalar_select 0, %s10, %s8
  loop: start=0, step=1, limit=4
  $region2: #{up_forward.1} parent=0 // loop_pre_header
    _
  $region3: #{up_forward.1} parent=0 // loop_header
    %s13 = sphi 0, %s17
    %p14 = scmp.ge.s32.totalorder %s13, 4
    %s23 = sphi 0, %s25
    %s26 = sphi 0, %s23
    %s27 = sphi 0, %s26
    %s43 = sphi 0, %s27
    %s47 = sphi 0, %s47
    %s49 = sphi 0, %s47
    %s50 = sphi 0, %s49
    %s64 = sphi 0, %s50
    %s68 = sphi 0, %s68
    %s70 = sphi 0, %s68
    %s71 = sphi 0, %s70
    %s85 = sphi 0, %s71
    %s89 = sphi 0, %s89
    %s91 = sphi 0, %s89
    %s92 = sphi 0, %s91
    %s106 = sphi 0, %s92
    %s110 = sphi 0, %s110
    %s112 = sphi 0, %s110
    %s113 = sphi 0, %s112
    %s127 = sphi 0, %s113
    %s131 = sphi 0, %s131
    %s133 = sphi 0, %s131
    %s134 = sphi 0, %s133
    %s148 = sphi 0, %s134
    %s152 = sphi 0, %s152
    %s154 = sphi 0, %s152
    %s155 = sphi 0, %s154
    %s169 = sphi 0, %s155
    %s175 = sphi 0, %s177
    %s178 = sphi 0, %s175
    %s179 = sphi 0, %s178
    %s195 = sphi 0, %s179
  $region4: #{up_forward.1} parent=0 // loop_header_branch
    %16 = sbr.rel (%p14) target = $region8
  $region5: #{up_forward.1} parent=0 // loop_body
    %s18 = ssub.s32 %s13, 1
    %s19 = ssub.s32 %s13, 2
    %s20 = sadd.s32 %s13, 1
    %s21 = ssub.s32 %s13, %s20
    %p22 = scmp.eq.s32.totalorder %s21, 0
    %s24 = sadd.s32 %s23, 1
    %s25 = scalar_select %p22, %s23, %s24
    %p28 = pneg %p22
    %p29 = scmp.eq.s32.totalorder %s13, 1
    %p30 = por %p28, %p29
    %p31 = scmp.ne.s32.totalorder %s23, %s26
    %p32 = scmp.eq.s32.totalorder %s13, 0
    %p33 = por %p31, %p32
    %p34 = scmp.ne.s32.totalorder %s23, %s26
    %p35 = scmp.eq.s32.totalorder %s18, 1
    %p36 = por %p34, %p35
    %p37 = scmp.ne.s32.totalorder %s26, %s27
    %p38 = scmp.eq.s32.totalorder %s18, 0
    %p39 = por %p37, %p38
    %p40 = scmp.ne.s32.totalorder %s26, %s27
    %p41 = scmp.eq.s32.totalorder %s19, 1
    %p42 = por %p40, %p41
    %p44 = scmp.ne.s32.totalorder %s27, %s43
    %p45 = scmp.eq.s32.totalorder %s19, 0
    %p46 = por %p44, %p45
    %s48 = sadd.s32 %s47, 1
    %p51 = scmp.eq.s32.totalorder %s13, 1
    %p52 = scmp.ne.s32.totalorder %s47, %s49
    %p53 = scmp.eq.s32.totalorder %s13, 0
    %p54 = por %p52, %p53
    %p55 = scmp.ne.s32.totalorder %s47, %s49
    %p56 = scmp.eq.s32.totalorder %s18, 1
    %p57 = por %p55, %p56
    %p58 = scmp.ne.s32.totalorder %s49, %s50
    %p59 = scmp.eq.s32.totalorder %s18, 0
    %p60 = por %p58, %p59
    %p61 = scmp.ne.s32.totalorder %s49, %s50
    %p62 = scmp.eq.s32.totalorder %s19, 1
    %p63 = por %p61, %p62
    %p65 = scmp.ne.s32.totalorder %s50, %s64
    %p66 = scmp.eq.s32.totalorder %s19, 0
    %p67 = por %p65, %p66
    %s69 = sadd.s32 %s68, 1
    %p72 = scmp.eq.s32.totalorder %s13, 1
    %p73 = scmp.ne.s32.totalorder %s68, %s70
    %p74 = scmp.eq.s32.totalorder %s13, 0
    %p75 = por %p73, %p74
    %p76 = scmp.ne.s32.totalorder %s68, %s70
    %p77 = scmp.eq.s32.totalorder %s18, 1
    %p78 = por %p76, %p77
    %p79 = scmp.ne.s32.totalorder %s70, %s71
    %p80 = scmp.eq.s32.totalorder %s18, 0
    %p81 = por %p79, %p80
    %p82 = scmp.ne.s32.totalorder %s70, %s71
    %p83 = scmp.eq.s32.totalorder %s19, 1
    %p84 = por %p82, %p83
    %p86 = scmp.ne.s32.totalorder %s71, %s85
    %p87 = scmp.eq.s32.totalorder %s19, 0
    %p88 = por %p86, %p87
    %s90 = sadd.s32 %s89, 1
    %p93 = scmp.eq.s32.totalorder %s13, 1
    %p94 = scmp.ne.s32.totalorder %s89, %s91
    %p95 = scmp.eq.s32.totalorder %s13, 0
    %p96 = por %p94, %p95
    %p97 = scmp.ne.s32.totalorder %s89, %s91
    %p98 = scmp.eq.s32.totalorder %s18, 1
    %p99 = por %p97, %p98
    %p100 = scmp.ne.s32.totalorder %s91, %s92
    %p101 = scmp.eq.s32.totalorder %s18, 0
    %p102 = por %p100, %p101
    %p103 = scmp.ne.s32.totalorder %s91, %s92
    %p104 = scmp.eq.s32.totalorder %s19, 1
    %p105 = por %p103, %p104
    %p107 = scmp.ne.s32.totalorder %s92, %s106
    %p108 = scmp.eq.s32.totalorder %s19, 0
    %p109 = por %p107, %p108
    %s111 = sadd.s32 %s110, 1
    %p114 = scmp.eq.s32.totalorder %s13, 1
    %p115 = scmp.ne.s32.totalorder %s110, %s112
    %p116 = scmp.eq.s32.totalorder %s13, 0
    %p117 = por %p115, %p116
    %p118 = scmp.ne.s32.totalorder %s110, %s112
    %p119 = scmp.eq.s32.totalorder %s18, 1
    %p120 = por %p118, %p119
    %p121 = scmp.ne.s32.totalorder %s112, %s113
    %p122 = scmp.eq.s32.totalorder %s18, 0
    %p123 = por %p121, %p122
    %p124 = scmp.ne.s32.totalorder %s112, %s113
    %p125 = scmp.eq.s32.totalorder %s19, 1
    %p126 = por %p124, %p125
    %p128 = scmp.ne.s32.totalorder %s113, %s127
    %p129 = scmp.eq.s32.totalorder %s19, 0
    %p130 = por %p128, %p129
    %s132 = sadd.s32 %s131, 1
    %p135 = scmp.eq.s32.totalorder %s13, 1
    %p136 = scmp.ne.s32.totalorder %s131, %s133
    %p137 = scmp.eq.s32.totalorder %s13, 0
    %p138 = por %p136, %p137
    %p139 = scmp.ne.s32.totalorder %s131, %s133
    %p140 = scmp.eq.s32.totalorder %s18, 1
    %p141 = por %p139, %p140
    %p142 = scmp.ne.s32.totalorder %s133, %s134
    %p143 = scmp.eq.s32.totalorder %s18, 0
    %p144 = por %p142, %p143
    %p145 = scmp.ne.s32.totalorder %s133, %s134
    %p146 = scmp.eq.s32.totalorder %s19, 1
    %p147 = por %p145, %p146
    %p149 = scmp.ne.s32.totalorder %s134, %s148
    %p150 = scmp.eq.s32.totalorder %s19, 0
    %p151 = por %p149, %p150
    %s153 = sadd.s32 %s152, 1
    %p156 = scmp.eq.s32.totalorder %s13, 1
    %p157 = scmp.ne.s32.totalorder %s152, %s154
    %p158 = scmp.eq.s32.totalorder %s13, 0
    %p159 = por %p157, %p158
    %p160 = scmp.ne.s32.totalorder %s152, %s154
    %p161 = scmp.eq.s32.totalorder %s18, 1
    %p162 = por %p160, %p161
    %p163 = scmp.ne.s32.totalorder %s154, %s155
    %p164 = scmp.eq.s32.totalorder %s18, 0
    %p165 = por %p163, %p164
    %p166 = scmp.ne.s32.totalorder %s154, %s155
    %p167 = scmp.eq.s32.totalorder %s19, 1
    %p168 = por %p166, %p167
    %p170 = scmp.ne.s32.totalorder %s155, %s169
    %p171 = scmp.eq.s32.totalorder %s19, 0
    %p172 = por %p170, %p171
    %s173 = ssub.s32 %s13, %s20
    %p174 = scmp.eq.s32.totalorder %s173, 0
    %s176 = sadd.s32 %s175, 1
    %s177 = scalar_select %p174, %s175, %s176
    %p180 = pneg %p174
    %p181 = scmp.eq.s32.totalorder %s13, 1
    %p182 = por %p180, %p181
    %p183 = scmp.ne.s32.totalorder %s175, %s178
    %p184 = scmp.eq.s32.totalorder %s13, 0
    %p185 = por %p183, %p184
    %p186 = scmp.ne.s32.totalorder %s175, %s178
    %p187 = scmp.eq.s32.totalorder %s18, 1
    %p188 = por %p186, %p187
    %p189 = scmp.ne.s32.totalorder %s178, %s179
    %p190 = scmp.eq.s32.totalorder %s18, 0
    %p191 = por %p189, %p190
    %p192 = scmp.ne.s32.totalorder %s178, %s179
    %p193 = scmp.eq.s32.totalorder %s19, 1
    %p194 = por %p192, %p193
    %p196 = scmp.ne.s32.totalorder %s179, %s195
    %p197 = scmp.eq.s32.totalorder %s19, 0
    %p198 = por %p196, %p197
    %p199 = scmp.le.s32.totalorder 1, %s13
    %p200 = scmp.lt.s32.totalorder %s13, 3
    %p201 = pnand %p199, %p200
    %p202 = pneg %p201
    // Predicated region
    $region9: #{up_forward.1} parent=5 // pred_check
      _
    $region10: #{up_forward.1} parent=5 // pred_check_branch
      %204 = sbr.rel (%p201) target = $region12
    $region11: #{up_forward.1} parent=5 // pred_region
      %s205 = ssub.s32 %s13, 1
      // Predicated region
      $region13: #{up_forward.1} parent=11 // pred_check
        %p206 = pneg %p60
      $region14: #{up_forward.1} parent=11 // pred_check_branch
        %208 = sbr.rel (%p206) target = $region16
      $region15: #{up_forward.1} parent=11 // pred_region
        _
      $region16: #{up_forward.1} parent=11 // pred_fallthru
        _
      // Predicated region
      $region17: #{up_forward.1} parent=11 // pred_check
        %p209 = pneg %p81
      $region18: #{up_forward.1} parent=11 // pred_check_branch
        %211 = sbr.rel (%p209) target = $region20
      $region19: #{up_forward.1} parent=11 // pred_region
        _
      $region20: #{up_forward.1} parent=11 // pred_fallthru
        _
      // Predicated region
      $region21: #{up_forward.1} parent=11 // pred_check
        %p212 = pneg %p102
      $region22: #{up_forward.1} parent=11 // pred_check_branch
        %214 = sbr.rel (%p212) target = $region24
      $region23: #{up_forward.1} parent=11 // pred_region
        _
      $region24: #{up_forward.1} parent=11 // pred_fallthru
        _
      // Predicated region
      $region25: #{up_forward.1} parent=11 // pred_check
        %p215 = pneg %p123
      $region26: #{up_forward.1} parent=11 // pred_check_branch
        %217 = sbr.rel (%p215) target = $region28
      $region27: #{up_forward.1} parent=11 // pred_region
        _
      $region28: #{up_forward.1} parent=11 // pred_fallthru
        _
      // Predicated region
      $region29: #{up_forward.1} parent=11 // pred_check
        %p218 = pneg %p144
      $region30: #{up_forward.1} parent=11 // pred_check_branch
        %220 = sbr.rel (%p218) target = $region32
      $region31: #{up_forward.1} parent=11 // pred_region
        _
      $region32: #{up_forward.1} parent=11 // pred_fallthru
        _
      // Predicated region
      $region33: #{up_forward.1} parent=11 // pred_check
        %p221 = pneg %p165
      $region34: #{up_forward.1} parent=11 // pred_check_branch
        %223 = sbr.rel (%p221) target = $region36
      $region35: #{up_forward.1} parent=11 // pred_region
        _
      $region36: #{up_forward.1} parent=11 // pred_fallthru
        _
    $region12: #{up_forward.1} parent=5 // pred_fallthru
      _
    %p224 = scmp.lt.s32.totalorder %s13, 2
    // Predicated region
    $region37: #{up_forward.1} parent=5 // pred_check
      %p225 = pneg %p224
    $region38: #{up_forward.1} parent=5 // pred_check_branch
      %227 = sbr.rel (%p225) target = $region40
    $region39: #{up_forward.1} parent=5 // pred_region
      // Predicated region
      $region41: #{up_forward.1} parent=39 // pred_check
        %p228 = pneg %p33
      $region42: #{up_forward.1} parent=39 // pred_check_branch
        %230 = sbr.rel (%p228) target = $region44
      $region43: #{up_forward.1} parent=39 // pred_region
        %p231 = scmp.lt.s32.totalorder %s13, 1
        %s232 = scalar_select %p231, %s13, 1
        %s233 = smul.addr %s232, 15
        %s234 = smul.addr %s233, 4
        %s235 = scalar_lea.vmem %s0, %s234
      $region44: #{up_forward.1} parent=39 // pred_fallthru
        _
    $region40: #{up_forward.1} parent=5 // pred_fallthru
      _
    %p236 = scmp.le.s32.totalorder 1, %s13
    %p237 = scmp.lt.s32.totalorder %s13, 3
    %p238 = pnand %p236, %p237
    %p239 = pneg %p238
    // Predicated region
    $region45: #{up_forward.1} parent=5 // pred_check
      _
    $region46: #{up_forward.1} parent=5 // pred_check_branch
      %241 = sbr.rel (%p238) target = $region48
    $region47: #{up_forward.1} parent=5 // pred_region
      %s242 = ssub.s32 %s13, 1
      %p243 = scmp.lt.s32.totalorder %s18, 1
      %s244 = scalar_select %p243, %s18, 1
      %s245 = smul.addr %s244, 15
      %s246 = smul.addr %s245, 4
      %s247 = scalar_lea.vmem %s0, %s246
      %p248 = pneg %p39
      %p249 = pneg %p36
      %p250 = pneg %p60
      %p251 = pneg %p57
      %p252 = pneg %p81
      %p253 = pneg %p78
      %p254 = pneg %p102
      %p255 = pneg %p99
      %p256 = pneg %p123
      %p257 = pneg %p120
      %p258 = pneg %p144
      %p259 = pneg %p141
      %p260 = pneg %p165
      %p261 = pneg %p162
      %p262 = pneg %p191
      %p263 = pneg %p188
      %p264 = scmp.lt.s32.totalorder %s18, 1
      %s265 = scalar_select %p264, %s18, 1
      %s266 = smul.addr %s265, 4
      %s267 = smul.addr %s266, 4
      %s268 = scalar_lea.vmem %s7, %s267
      %p269 = scmp.lt.s32.totalorder %s18, 1
      %s270 = scalar_select %p269, %s18, 1
      %s271 = smul.addr %s270, 15
      %s272 = smul.addr %s271, 4
      %s273 = scalar_lea.vmem %s0, %s272
      %p274 = scmp.lt.s32.totalorder %s18, 1
      %s275 = scalar_select %p274, %s18, 1
      %s276 = smul.addr %s275, 4
      %s277 = smul.addr %s276, 4
      %s278 = scalar_lea.vmem %s7, %s277
      %v280 = vld [vmem:[%s273] sm:$0xff]
      %v281 = vld [vmem:[%s273 + $0x8] sm:$0xff]
      %v282 = vld [vmem:[%s273 + $0x10] sm:$0xf]
      %v283 = vld [vmem:[%s273 + $0x14] sm:$0xff]
      %v284 = vld [vmem:[%s273 + $0x1c] sm:$0xff]
      %v285 = vld [vmem:[%s273 + $0x24] sm:$0xf]
      %v286 = vld [vmem:[%s273 + $0x28] sm:$0x11]
      %v287 = vld [vmem:[%s273 + $0x30] sm:$0x11]
      %v288 = vld [vmem:[%s273 + $0x38] sm:$0x1]
      %v289 = vld [vmem:[%s1] sm:$0xff]
      %v290 = vld [vmem:[%s1 + $0x8] sm:$0xff]
      %v291 = vld [vmem:[%s1 + $0x10] sm:$0xff]
      %v292 = vld [vmem:[%s1 + $0x18] sm:$0xff]
      %v293 = vld [vmem:[%s1 + $0x20] sm:$0xff]
      %v294 = vld [vmem:[%s1 + $0x28] sm:$0xff]
      %v295 = vld [vmem:[%s1 + $0x30] sm:$0xff]
      %v296 = vld [vmem:[%s1 + $0x38] sm:$0xff]
      %v297 = vld [vmem:[%s1 + $0x40] sm:$0xff]
      %v298 = vld [vmem:[%s1 + $0x48] sm:$0xff]
      %v299 = vld [vmem:[%s1 + $0x50] sm:$0xff]
      %v300 = vld [vmem:[%s1 + $0x58] sm:$0xff]
      %v301 = vld [vmem:[%s1 + $0x60] sm:$0xff]
      %v302 = vld [vmem:[%s1 + $0x68] sm:$0xff]
      %v303 = vld [vmem:[%s1 + $0x70] sm:$0xff]
      %v304 = vld [vmem:[%s1 + $0x78] sm:$0xff]
      %v305 = vld [vmem:[%s1 + $0x80] sm:$0xff]
      %v306 = vld [vmem:[%s1 + $0x88] sm:$0xff]
      %v307 = vld [vmem:[%s1 + $0x90] sm:$0xff]
      %v308 = vld [vmem:[%s1 + $0x98] sm:$0xff]
      %v309 = vld [vmem:[%s1 + $0xa0] sm:$0xff]
      %v310 = vld [vmem:[%s1 + $0xa8] sm:$0xff]
      %v311 = vld [vmem:[%s1 + $0xb0] sm:$0xff]
      %v312 = vld [vmem:[%s1 + $0xb8] sm:$0xff]
      %v313 = vld [vmem:[%s1 + $0xc0] sm:$0xff]
      %v314 = vld [vmem:[%s1 + $0xc8] sm:$0xff]
      %v315 = vld [vmem:[%s1 + $0xd0] sm:$0xff]
      %v316 = vld [vmem:[%s1 + $0xd8] sm:$0xff]
      %v317 = vld [vmem:[%s1 + $0xe0] sm:$0xff]
      %v318 = vld [vmem:[%s1 + $0xe8] sm:$0xff]
      %v319 = vld [vmem:[%s1 + $0xf0] sm:$0xff]
      %v320 = vld [vmem:[%s1 + $0xf8] sm:$0xff]
      %v321 = vld [vmem:[%s1 + $0x100] sm:$0xff]
      %v322 = vld [vmem:[%s1 + $0x108] sm:$0xff]
      %v323 = vld [vmem:[%s1 + $0x110] sm:$0xff]
      %v324 = vld [vmem:[%s1 + $0x118] sm:$0xff]
      %v325 = vld [vmem:[%s1 + $0x120] sm:$0xff]
      %v326 = vld [vmem:[%s1 + $0x128] sm:$0xff]
      %v327 = vld [vmem:[%s1 + $0x130] sm:$0xff]
      %v328 = vld [vmem:[%s1 + $0x138] sm:$0xff]
      %v329 = vld [vmem:[%s1 + $0x140] sm:$0xff]
      %v330 = vld [vmem:[%s1 + $0x148] sm:$0xff]
      %v331 = vld [vmem:[%s1 + $0x150] sm:$0xff]
      %v332 = vld [vmem:[%s1 + $0x158] sm:$0xff]
      %v333 = vld [vmem:[%s1 + $0x160] sm:$0xff]
      %v334 = vld [vmem:[%s1 + $0x168] sm:$0xff]
      %v335 = vld [vmem:[%s1 + $0x170] sm:$0xff]
      %v336 = vld [vmem:[%s1 + $0x178] sm:$0xff]
      %v337 = vld [vmem:[%s1 + $0x180] sm:$0xff]
      %v338 = vld [vmem:[%s1 + $0x188] sm:$0xff]
      %v339 = vld [vmem:[%s1 + $0x190] sm:$0xff]
      %v340 = vld [vmem:[%s1 + $0x198] sm:$0xff]
      %v341 = vld [vmem:[%s1 + $0x1a0] sm:$0xff]
      %v342 = vld [vmem:[%s1 + $0x1a8] sm:$0xff]
      %v343 = vld [vmem:[%s1 + $0x1b0] sm:$0xff]
      %v344 = vld [vmem:[%s1 + $0x1b8] sm:$0xff]
      %v345 = vld [vmem:[%s1 + $0x1c0] sm:$0xff]
      %v346 = vld [vmem:[%s1 + $0x1c8] sm:$0xff]
      %v347 = vld [vmem:[%s1 + $0x1d0] sm:$0xff]
      %v348 = vld [vmem:[%s1 + $0x1d8] sm:$0xff]
      %v349 = vld [vmem:[%s1 + $0x1e0] sm:$0xff]
      %v350 = vld [vmem:[%s1 + $0x1e8] sm:$0xff]
      %v351 = vld [vmem:[%s1 + $0x1f0] sm:$0xff]
      %v352 = vld [vmem:[%s1 + $0x1f8] sm:$0xff]
      %v353 = vld [vmem:[%s1 + $0x200] sm:$0xff]
      %v354 = vld [vmem:[%s1 + $0x208] sm:$0xff]
      %v355 = vld [vmem:[%s1 + $0x210] sm:$0xff]
      %v356 = vld [vmem:[%s1 + $0x218] sm:$0xff]
      %v357 = vld [vmem:[%s1 + $0x220] sm:$0xff]
      %v358 = vld [vmem:[%s1 + $0x228] sm:$0xff]
      %v359 = vld [vmem:[%s1 + $0x230] sm:$0xff]
      %v360 = vld [vmem:[%s1 + $0x238] sm:$0xff]
      %s361 = scalar_lea.vmem %s1, 576
      %v362 = vld [vmem:[%s361] sm:$0xff]
      %v363 = vld [vmem:[%s361 + $0x8] sm:$0xff]
      %v364 = vld [vmem:[%s361 + $0x10] sm:$0xff]
      %v365 = vld [vmem:[%s361 + $0x18] sm:$0xff]
      %v366 = vld [vmem:[%s361 + $0x20] sm:$0xff]
      %v367 = vld [vmem:[%s361 + $0x28] sm:$0xff]
      %v368 = vld [vmem:[%s361 + $0x30] sm:$0xff]
      %v369 = vld [vmem:[%s361 + $0x38] sm:$0xff]
      %v370 = vld [vmem:[%s361 + $0x40] sm:$0xff]
      %v371 = vld [vmem:[%s361 + $0x48] sm:$0xff]
      %v372 = vld [vmem:[%s361 + $0x50] sm:$0xff]
      %v373 = vld [vmem:[%s361 + $0x58] sm:$0xff]
      %v374 = vld [vmem:[%s361 + $0x60] sm:$0xff]
      %v375 = vld [vmem:[%s361 + $0x68] sm:$0xff]
      %v376 = vld [vmem:[%s361 + $0x70] sm:$0xff]
      %v377 = vld [vmem:[%s361 + $0x78] sm:$0xff]
      %v378 = vld [vmem:[%s361 + $0x80] sm:$0xff]
      %v379 = vld [vmem:[%s361 + $0x88] sm:$0xff]
      %v380 = vld [vmem:[%s361 + $0x90] sm:$0xff]
      %v381 = vld [vmem:[%s361 + $0x98] sm:$0xff]
      %v382 = vld [vmem:[%s361 + $0xa0] sm:$0xff]
      %v383 = vld [vmem:[%s361 + $0xa8] sm:$0xff]
      %v384 = vld [vmem:[%s361 + $0xb0] sm:$0xff]
      %v385 = vld [vmem:[%s361 + $0xb8] sm:$0xff]
      %v386 = vld [vmem:[%s361 + $0xc0] sm:$0xff]
      %v387 = vld [vmem:[%s361 + $0xc8] sm:$0xff]
      %v388 = vld [vmem:[%s361 + $0xd0] sm:$0xff]
      %v389 = vld [vmem:[%s361 + $0xd8] sm:$0xff]
      %v390 = vld [vmem:[%s361 + $0xe0] sm:$0xff]
      %v391 = vld [vmem:[%s361 + $0xe8] sm:$0xff]
      %v392 = vld [vmem:[%s361 + $0xf0] sm:$0xff]
      %v393 = vld [vmem:[%s361 + $0xf8] sm:$0xff]
      %v394 = vld [vmem:[%s361 + $0x100] sm:$0xff]
      %v395 = vld [vmem:[%s361 + $0x108] sm:$0xff]
      %v396 = vld [vmem:[%s361 + $0x110] sm:$0xff]
      %v397 = vld [vmem:[%s361 + $0x118] sm:$0xff]
      %v398 = vld [vmem:[%s361 + $0x120] sm:$0xff]
      %v399 = vld [vmem:[%s361 + $0x128] sm:$0xff]
      %v400 = vld [vmem:[%s361 + $0x130] sm:$0xff]
      %v401 = vld [vmem:[%s361 + $0x138] sm:$0xff]
      %v402 = vld [vmem:[%s361 + $0x140] sm:$0xff]
      %v403 = vld [vmem:[%s361 + $0x148] sm:$0xff]
      %v404 = vld [vmem:[%s361 + $0x150] sm:$0xff]
      %v405 = vld [vmem:[%s361 + $0x158] sm:$0xff]
      %v406 = vld [vmem:[%s361 + $0x160] sm:$0xff]
      %v407 = vld [vmem:[%s361 + $0x168] sm:$0xff]
      %v408 = vld [vmem:[%s361 + $0x170] sm:$0xff]
      %v409 = vld [vmem:[%s361 + $0x178] sm:$0xff]
      %v410 = vld [vmem:[%s361 + $0x180] sm:$0xff]
      %v411 = vld [vmem:[%s361 + $0x188] sm:$0xff]
      %v412 = vld [vmem:[%s361 + $0x190] sm:$0xff]
      %v413 = vld [vmem:[%s361 + $0x198] sm:$0xff]
      %v414 = vld [vmem:[%s361 + $0x1a0] sm:$0xff]
      %v415 = vld [vmem:[%s361 + $0x1a8] sm:$0xff]
      %v416 = vld [vmem:[%s361 + $0x1b0] sm:$0xff]
      %v417 = vld [vmem:[%s361 + $0x1b8] sm:$0xff]
      %v418 = vld [vmem:[%s361 + $0x1c0] sm:$0xff]
      %v419 = vld [vmem:[%s361 + $0x1c8] sm:$0xff]
      %v420 = vld [vmem:[%s361 + $0x1d0] sm:$0xff]
      %v421 = vld [vmem:[%s361 + $0x1d8] sm:$0xff]
      %v422 = vld [vmem:[%s361 + $0x1e0] sm:$0xff]
      %v423 = vld [vmem:[%s361 + $0x1e8] sm:$0xff]
      %v424 = vld [vmem:[%s361 + $0x1f0] sm:$0xff]
      %v425 = vld [vmem:[%s361 + $0x1f8] sm:$0xff]
      %v426 = vld [vmem:[%s361 + $0x200] sm:$0xff]
      %v427 = vld [vmem:[%s361 + $0x208] sm:$0xff]
      %v428 = vld [vmem:[%s361 + $0x210] sm:$0xff]
      %v429 = vld [vmem:[%s361 + $0x218] sm:$0xff]
      %v430 = vld [vmem:[%s361 + $0x220] sm:$0xff]
      %v431 = vld [vmem:[%s361 + $0x228] sm:$0xff]
      %v432 = vld [vmem:[%s361 + $0x230] sm:$0xff]
      %v433 = vld [vmem:[%s361 + $0x238] sm:$0xff]
      %v443 = vunpack.c.l.b16 %v280
      %v444 = vunpack.c.h.b16 %v280
      %v445 = vunpack.c.l.b16 %v281
      %v446 = vunpack.c.h.b16 %v281
      %v447 = vunpack.c.l.b16 %v282
      %v448 = vunpack.c.l.b16 %v283
      %v449 = vunpack.c.h.b16 %v283
      %v450 = vunpack.c.l.b16 %v284
      %v451 = vunpack.c.h.b16 %v284
      %v452 = vunpack.c.l.b16 %v285
      %v453 = vunpack.c.l.b16 %v286
      %v454 = vunpack.c.h.b16 %v286
      %v455 = vunpack.c.l.b16 %v287
      %v456 = vunpack.c.h.b16 %v287
      %v457 = vunpack.c.l.b16 %v288
      %v458 = vpack.c.b16 %v448, %v443
      %v459 = vpack.c.b16 %v449, %v444
      %v460 = vpack.c.b16 %v450, %v445
      %v461 = vpack.c.b16 %v451, %v446
      %v462 = vpack.c.b16 %v452, %v447
      %v463 = vpack.c.b16 %v453, %v453
      %v464 = vpack.c.b16 %v454, %v454
      %v465 = vpack.c.b16 %v455, %v455
      %v466 = vpack.c.b16 %v456, %v456
      %v467 = vpack.c.b16 %v457, %v457
      %vm468 = vsmask.f32 7424
      %v470 = vshrl.u32 %v458, 16
      %v472 = vshll.u32 %v458, 16
      %v474 = vrot.slane %v472, 1
      %v475 = vor.u32 %v470, %v474
      %v477 = vshll.u32 %v463, 16
      %v479 = vrot.slane %v477, 1
      %v480 = vsel %vm468, %v475, %v479
      %v482 = vshrl.u32 %v459, 16
      %v484 = vshll.u32 %v459, 16
      %v486 = vrot.slane %v484, 1
      %v487 = vor.u32 %v482, %v486
      %v489 = vshll.u32 %v464, 16
      %v491 = vrot.slane %v489, 1
      %v492 = vsel %vm468, %v487, %v491
      %v494 = vshrl.u32 %v460, 16
      %v496 = vshll.u32 %v460, 16
      %v498 = vrot.slane %v496, 1
      %v499 = vor.u32 %v494, %v498
      %v501 = vshll.u32 %v465, 16
      %v503 = vrot.slane %v501, 1
      %v504 = vsel %vm468, %v499, %v503
      %v506 = vshrl.u32 %v461, 16
      %v508 = vshll.u32 %v461, 16
      %v510 = vrot.slane %v508, 1
      %v511 = vor.u32 %v506, %v510
      %v513 = vshll.u32 %v466, 16
      %v515 = vrot.slane %v513, 1
      %v516 = vsel %vm468, %v511, %v515
      %v518 = vshrl.u32 %v462, 16
      %v520 = vshll.u32 %v462, 16
      %v522 = vrot.slane %v520, 1
      %v523 = vor.u32 %v518, %v522
      %v525 = vshll.u32 %v467, 16
      %v527 = vrot.slane %v525, 1
      %v528 = vsel %vm468, %v523, %v527
      %v605 = vunpack.c.l.b16 %v362
      %v606 = vunpack.c.h.b16 %v362
      %v607 = vunpack.c.l.b16 %v363
      %v608 = vunpack.c.h.b16 %v363
      %v609 = vunpack.c.l.b16 %v364
      %v610 = vunpack.c.h.b16 %v364
      %v611 = vunpack.c.l.b16 %v365
      %v612 = vunpack.c.h.b16 %v365
      %v613 = vunpack.c.l.b16 %v366
      %v614 = vunpack.c.h.b16 %v366
      %v615 = vunpack.c.l.b16 %v367
      %v616 = vunpack.c.h.b16 %v367
      %v617 = vunpack.c.l.b16 %v368
      %v618 = vunpack.c.h.b16 %v368
      %v619 = vunpack.c.l.b16 %v369
      %v620 = vunpack.c.h.b16 %v369
      %v621 = vunpack.c.l.b16 %v370
      %v622 = vunpack.c.h.b16 %v370
      %v623 = vunpack.c.l.b16 %v371
      %v624 = vunpack.c.h.b16 %v371
      %v625 = vunpack.c.l.b16 %v372
      %v626 = vunpack.c.h.b16 %v372
      %v627 = vunpack.c.l.b16 %v373
      %v628 = vunpack.c.h.b16 %v373
      %v629 = vunpack.c.l.b16 %v374
      %v630 = vunpack.c.h.b16 %v374
      %v631 = vunpack.c.l.b16 %v375
      %v632 = vunpack.c.h.b16 %v375
      %v633 = vunpack.c.l.b16 %v376
      %v634 = vunpack.c.h.b16 %v376
      %v635 = vunpack.c.l.b16 %v377
      %v636 = vunpack.c.h.b16 %v377
      %v637 = vunpack.c.l.b16 %v378
      %v638 = vunpack.c.h.b16 %v378
      %v639 = vunpack.c.l.b16 %v379
      %v640 = vunpack.c.h.b16 %v379
      %v641 = vunpack.c.l.b16 %v380
      %v642 = vunpack.c.h.b16 %v380
      %v643 = vunpack.c.l.b16 %v381
      %v644 = vunpack.c.h.b16 %v381
      %v645 = vunpack.c.l.b16 %v382
      %v646 = vunpack.c.h.b16 %v382
      %v647 = vunpack.c.l.b16 %v383
      %v648 = vunpack.c.h.b16 %v383
      %v649 = vunpack.c.l.b16 %v384
      %v650 = vunpack.c.h.b16 %v384
      %v651 = vunpack.c.l.b16 %v385
      %v652 = vunpack.c.h.b16 %v385
      %v653 = vunpack.c.l.b16 %v386
      %v654 = vunpack.c.h.b16 %v386
      %v655 = vunpack.c.l.b16 %v387
      %v656 = vunpack.c.h.b16 %v387
      %v657 = vunpack.c.l.b16 %v388
      %v658 = vunpack.c.h.b16 %v388
      %v659 = vunpack.c.l.b16 %v389
      %v660 = vunpack.c.h.b16 %v389
      %v661 = vunpack.c.l.b16 %v390
      %v662 = vunpack.c.h.b16 %v390
      %v663 = vunpack.c.l.b16 %v391
      %v664 = vunpack.c.h.b16 %v391
      %v665 = vunpack.c.l.b16 %v392
      %v666 = vunpack.c.h.b16 %v392
      %v667 = vunpack.c.l.b16 %v393
      %v668 = vunpack.c.h.b16 %v393
      %v669 = vunpack.c.l.b16 %v394
      %v670 = vunpack.c.h.b16 %v394
      %v671 = vunpack.c.l.b16 %v395
      %v672 = vunpack.c.h.b16 %v395
      %v673 = vunpack.c.l.b16 %v396
      %v674 = vunpack.c.h.b16 %v396
      %v675 = vunpack.c.l.b16 %v397
      %v676 = vunpack.c.h.b16 %v397
      %v677 = vunpack.c.l.b16 %v398
      %v678 = vunpack.c.h.b16 %v398
      %v679 = vunpack.c.l.b16 %v399
      %v680 = vunpack.c.h.b16 %v399
      %v681 = vunpack.c.l.b16 %v400
      %v682 = vunpack.c.h.b16 %v400
      %v683 = vunpack.c.l.b16 %v401
      %v684 = vunpack.c.h.b16 %v401
      %v685 = vunpack.c.l.b16 %v402
      %v686 = vunpack.c.h.b16 %v402
      %v687 = vunpack.c.l.b16 %v403
      %v688 = vunpack.c.h.b16 %v403
      %v689 = vunpack.c.l.b16 %v404
      %v690 = vunpack.c.h.b16 %v404
      %v691 = vunpack.c.l.b16 %v405
      %v692 = vunpack.c.h.b16 %v405
      %v693 = vunpack.c.l.b16 %v406
      %v694 = vunpack.c.h.b16 %v406
      %v695 = vunpack.c.l.b16 %v407
      %v696 = vunpack.c.h.b16 %v407
      %v697 = vunpack.c.l.b16 %v408
      %v698 = vunpack.c.h.b16 %v408
      %v699 = vunpack.c.l.b16 %v409
      %v700 = vunpack.c.h.b16 %v409
      %v701 = vunpack.c.l.b16 %v410
      %v702 = vunpack.c.h.b16 %v410
      %v703 = vunpack.c.l.b16 %v411
      %v704 = vunpack.c.h.b16 %v411
      %v705 = vunpack.c.l.b16 %v412
      %v706 = vunpack.c.h.b16 %v412
      %v707 = vunpack.c.l.b16 %v413
      %v708 = vunpack.c.h.b16 %v413
      %v709 = vunpack.c.l.b16 %v414
      %v710 = vunpack.c.h.b16 %v414
      %v711 = vunpack.c.l.b16 %v415
      %v712 = vunpack.c.h.b16 %v415
      %v713 = vunpack.c.l.b16 %v416
      %v714 = vunpack.c.h.b16 %v416
      %v715 = vunpack.c.l.b16 %v417
      %v716 = vunpack.c.h.b16 %v417
      %v717 = vunpack.c.l.b16 %v418
      %v718 = vunpack.c.h.b16 %v418
      %v719 = vunpack.c.l.b16 %v419
      %v720 = vunpack.c.h.b16 %v419
      %v721 = vunpack.c.l.b16 %v420
      %v722 = vunpack.c.h.b16 %v420
      %v723 = vunpack.c.l.b16 %v421
      %v724 = vunpack.c.h.b16 %v421
      %v725 = vunpack.c.l.b16 %v422
      %v726 = vunpack.c.h.b16 %v422
      %v727 = vunpack.c.l.b16 %v423
      %v728 = vunpack.c.h.b16 %v423
      %v729 = vunpack.c.l.b16 %v424
      %v730 = vunpack.c.h.b16 %v424
      %v731 = vunpack.c.l.b16 %v425
      %v732 = vunpack.c.h.b16 %v425
      %v733 = vunpack.c.l.b16 %v426
      %v734 = vunpack.c.h.b16 %v426
      %v735 = vunpack.c.l.b16 %v427
      %v736 = vunpack.c.h.b16 %v427
      %v737 = vunpack.c.l.b16 %v428
      %v738 = vunpack.c.h.b16 %v428
      %v739 = vunpack.c.l.b16 %v429
      %v740 = vunpack.c.h.b16 %v429
      %v741 = vunpack.c.l.b16 %v430
      %v742 = vunpack.c.h.b16 %v430
      %v743 = vunpack.c.l.b16 %v431
      %v744 = vunpack.c.h.b16 %v431
      %v745 = vunpack.c.l.b16 %v432
      %v746 = vunpack.c.h.b16 %v432
      %v747 = vunpack.c.l.b16 %v433
      %v748 = vunpack.c.h.b16 %v433
      %v749 = vpack.c.b16 %v607, %v605
      %v750 = vpack.c.b16 %v608, %v606
      %v751 = vpack.c.b16 %v611, %v609
      %v752 = vpack.c.b16 %v612, %v610
      %v753 = vpack.c.b16 %v615, %v613
      %v754 = vpack.c.b16 %v616, %v614
      %v755 = vpack.c.b16 %v619, %v617
      %v756 = vpack.c.b16 %v620, %v618
      %v757 = vpack.c.b16 %v623, %v621
      %v758 = vpack.c.b16 %v624, %v622
      %v759 = vpack.c.b16 %v627, %v625
      %v760 = vpack.c.b16 %v628, %v626
      %v761 = vpack.c.b16 %v631, %v629
      %v762 = vpack.c.b16 %v632, %v630
      %v763 = vpack.c.b16 %v635, %v633
      %v764 = vpack.c.b16 %v636, %v634
      %v765 = vpack.c.b16 %v639, %v637
      %v766 = vpack.c.b16 %v640, %v638
      %v767 = vpack.c.b16 %v643, %v641
      %v768 = vpack.c.b16 %v644, %v642
      %v769 = vpack.c.b16 %v647, %v645
      %v770 = vpack.c.b16 %v648, %v646
      %v771 = vpack.c.b16 %v651, %v649
      %v772 = vpack.c.b16 %v652, %v650
      %v773 = vpack.c.b16 %v655, %v653
      %v774 = vpack.c.b16 %v656, %v654
      %v775 = vpack.c.b16 %v659, %v657
      %v776 = vpack.c.b16 %v660, %v658
      %v777 = vpack.c.b16 %v663, %v661
      %v778 = vpack.c.b16 %v664, %v662
      %v779 = vpack.c.b16 %v667, %v665
      %v780 = vpack.c.b16 %v668, %v666
      %v781 = vpack.c.b16 %v671, %v669
      %v782 = vpack.c.b16 %v672, %v670
      %v783 = vpack.c.b16 %v675, %v673
      %v784 = vpack.c.b16 %v676, %v674
      %v785 = vpack.c.b16 %v679, %v677
      %v786 = vpack.c.b16 %v680, %v678
      %v787 = vpack.c.b16 %v683, %v681
      %v788 = vpack.c.b16 %v684, %v682
      %v789 = vpack.c.b16 %v687, %v685
      %v790 = vpack.c.b16 %v688, %v686
      %v791 = vpack.c.b16 %v691, %v689
      %v792 = vpack.c.b16 %v692, %v690
      %v793 = vpack.c.b16 %v695, %v693
      %v794 = vpack.c.b16 %v696, %v694
      %v795 = vpack.c.b16 %v699, %v697
      %v796 = vpack.c.b16 %v700, %v698
      %v797 = vpack.c.b16 %v703, %v701
      %v798 = vpack.c.b16 %v704, %v702
      %v799 = vpack.c.b16 %v707, %v705
      %v800 = vpack.c.b16 %v708, %v706
      %v801 = vpack.c.b16 %v711, %v709
      %v802 = vpack.c.b16 %v712, %v710
      %v803 = vpack.c.b16 %v715, %v713
      %v804 = vpack.c.b16 %v716, %v714
      %v805 = vpack.c.b16 %v719, %v717
      %v806 = vpack.c.b16 %v720, %v718
      %v807 = vpack.c.b16 %v723, %v721
      %v808 = vpack.c.b16 %v724, %v722
      %v809 = vpack.c.b16 %v727, %v725
      %v810 = vpack.c.b16 %v728, %v726
      %v811 = vpack.c.b16 %v731, %v729
      %v812 = vpack.c.b16 %v732, %v730
      %v813 = vpack.c.b16 %v735, %v733
      %v814 = vpack.c.b16 %v736, %v734
      %v815 = vpack.c.b16 %v739, %v737
      %v816 = vpack.c.b16 %v740, %v738
      %v817 = vpack.c.b16 %v743, %v741
      %v818 = vpack.c.b16 %v744, %v742
      %v819 = vpack.c.b16 %v747, %v745
      %v820 = vpack.c.b16 %v748, %v746
      %vm893 = vcmask 523264
      %v895 = vsel %vm893, %v528, 0
      %897 = vmatprep.subr.bf16.mxu0 %v750
      %898 = vmatpush1.bf16.msra.mxu0 %v749
      %899 = vmatprep.subr.bf16.mxu0 %v752
      %900 = vmatpush1.bf16.msra.mxu0 %v751
      %901 = vmatprep.subr.bf16.mxu0 %v754
      %902 = vmatpush1.bf16.msra.mxu0 %v753
      %903 = vmatprep.subr.bf16.mxu0 %v756
      %904 = vmatpush1.bf16.msra.mxu0 %v755
      %905 = vmatprep.subr.bf16.mxu0 %v758
      %906 = vmatpush1.bf16.msra.mxu0 %v757
      %907 = vmatprep.subr.bf16.mxu0 %v760
      %908 = vmatpush1.bf16.msra.mxu0 %v759
      %909 = vmatprep.subr.bf16.mxu0 %v762
      %910 = vmatpush1.bf16.msra.mxu0 %v761
      %911 = vmatprep.subr.bf16.mxu0 %v764
      %912 = vmatpush1.bf16.msra.mxu0 %v763
      %913 = vmatprep.subr.bf16.mxu0 %v766
      %914 = vmatpush1.bf16.msra.mxu0 %v765
      %915 = vmatprep.subr.bf16.mxu0 %v768
      %916 = vmatpush1.bf16.msra.mxu0 %v767
      %917 = vmatprep.subr.bf16.mxu0 %v770
      %918 = vmatpush1.bf16.msra.mxu0 %v769
      %919 = vmatprep.subr.bf16.mxu0 %v772
      %920 = vmatpush1.bf16.msra.mxu0 %v771
      %921 = vmatprep.subr.bf16.mxu0 %v774
      %922 = vmatpush1.bf16.msra.mxu0 %v773
      %923 = vmatprep.subr.bf16.mxu0 %v776
      %924 = vmatpush1.bf16.msra.mxu0 %v775
      %925 = vmatprep.subr.bf16.mxu0 %v778
      %926 = vmatpush1.bf16.msra.mxu0 %v777
      %927 = vmatprep.subr.bf16.mxu0 %v780
      %928 = vmatpush1.bf16.msra.mxu0 %v779
      %929 = vmatprep.mubr.bf16.mxu0 %v492
      %930 = vmatmul.mubr.bf16.gmra.mrb[0].mxu0 %v480
      %v931 = vpop.f32.mrb[0].mxu0
      %v932 = vadd.f32 0.0, %v931
      %v933 = vpop.f32.mrb[0].mxu0
      %v934 = vadd.f32 0.0, %v933
      %v935 = vpop.f32.mrb[0].mxu0
      %v936 = vadd.f32 0.0, %v935
      %v937 = vpop.f32.mrb[0].mxu0
      %v938 = vadd.f32 0.0, %v937
      %939 = vdwg.mxu0
      %940 = vmatprep.subr.bf16.mxu0 %v782
      %941 = vmatpush1.bf16.msra.mxu0 %v781
      %942 = vmatprep.subr.bf16.mxu0 %v784
      %943 = vmatpush1.bf16.msra.mxu0 %v783
      %944 = vmatprep.subr.bf16.mxu0 %v786
      %945 = vmatpush1.bf16.msra.mxu0 %v785
      %946 = vmatprep.subr.bf16.mxu0 %v788
      %947 = vmatpush1.bf16.msra.mxu0 %v787
      %948 = vmatprep.subr.bf16.mxu0 %v790
      %949 = vmatpush1.bf16.msra.mxu0 %v789
      %950 = vmatprep.subr.bf16.mxu0 %v792
      %951 = vmatpush1.bf16.msra.mxu0 %v791
      %952 = vmatprep.subr.bf16.mxu0 %v794
      %953 = vmatpush1.bf16.msra.mxu0 %v793
      %954 = vmatprep.subr.bf16.mxu0 %v796
      %955 = vmatpush1.bf16.msra.mxu0 %v795
      %956 = vmatprep.subr.bf16.mxu0 %v798
      %957 = vmatpush1.bf16.msra.mxu0 %v797
      %958 = vmatprep.subr.bf16.mxu0 %v800
      %959 = vmatpush1.bf16.msra.mxu0 %v799
      %960 = vmatprep.subr.bf16.mxu0 %v802
      %961 = vmatpush1.bf16.msra.mxu0 %v801
      %962 = vmatprep.subr.bf16.mxu0 %v804
      %963 = vmatpush1.bf16.msra.mxu0 %v803
      %964 = vmatprep.subr.bf16.mxu0 %v806
      %965 = vmatpush1.bf16.msra.mxu0 %v805
      %966 = vmatprep.subr.bf16.mxu0 %v808
      %967 = vmatpush1.bf16.msra.mxu0 %v807
      %968 = vmatprep.subr.bf16.mxu0 %v810
      %969 = vmatpush1.bf16.msra.mxu0 %v809
      %970 = vmatprep.subr.bf16.mxu0 %v812
      %971 = vmatpush1.bf16.msra.mxu0 %v811
      %972 = vmatprep.mubr.bf16.mxu0 %v516
      %973 = vmatmul.mubr.bf16.gmra.mrb[0].mxu0 %v504
      %v974 = vpop.f32.mrb[0].mxu0
      %v975 = vadd.f32 %v932, %v974
      %v976 = vpop.f32.mrb[0].mxu0
      %v977 = vadd.f32 %v934, %v976
      %v978 = vpop.f32.mrb[0].mxu0
      %v979 = vadd.f32 %v936, %v978
      %v980 = vpop.f32.mrb[0].mxu0
      %v981 = vadd.f32 %v938, %v980
      %982 = vdwg.mxu0
      %983 = vmatprep.subr.bf16.mxu0 %v814
      %984 = vmatpush1.bf16.msra.mxu0 %v813
      %985 = vmatprep.subr.bf16.mxu0 %v816
      %986 = vmatpush1.bf16.msra.mxu0 %v815
      %987 = vmatprep.subr.bf16.mxu0 %v818
      %988 = vmatpush1.bf16.msra.mxu0 %v817
      %989 = vmatprep.subr.bf16.mxu0 %v820
      %990 = vmatpush1.bf16.msra.mxu0 %v819
      %991 = vmatprep.subr.bf16.mxu0 0
      %992 = vmatpush1.bf16.msra.mxu0 0
      %993 = vmatprep.subr.bf16.mxu0 0
      %994 = vmatpush1.bf16.msra.mxu0 0
      %995 = vmatprep.subr.bf16.mxu0 0
      %996 = vmatpush1.bf16.msra.mxu0 0
      %997 = vmatprep.subr.bf16.mxu0 0
      %998 = vmatpush1.bf16.msra.mxu0 0
      %999 = vmatprep.subr.bf16.mxu0 0
      %1000 = vmatpush1.bf16.msra.mxu0 0
      %1001 = vmatprep.subr.bf16.mxu0 0
      %1002 = vmatpush1.bf16.msra.mxu0 0
      %1003 = vmatprep.subr.bf16.mxu0 0
      %1004 = vmatpush1.bf16.msra.mxu0 0
      %1005 = vmatprep.subr.bf16.mxu0 0
      %1006 = vmatpush1.bf16.msra.mxu0 0
      %1007 = vmatprep.subr.bf16.mxu0 0
      %1008 = vmatpush1.bf16.msra.mxu0 0
      %1009 = vmatprep.subr.bf16.mxu0 0
      %1010 = vmatpush1.bf16.msra.mxu0 0
      %1011 = vmatprep.subr.bf16.mxu0 0
      %1012 = vmatpush1.bf16.msra.mxu0 0
      %1013 = vmatprep.subr.bf16.mxu0 0
      %1014 = vmatpush1.bf16.msra.mxu0 0
      %1015 = vmatprep.mubr.bf16.mxu0 0
      %1016 = vmatmul.mubr.bf16.gmra.mrb[0].mxu0 %v895
      %v1017 = vpop.f32.mrb[0].mxu0
      %v1018 = vadd.f32 %v975, %v1017
      %v1019 = vpop.f32.mrb[0].mxu0
      %v1020 = vadd.f32 %v977, %v1019
      %v1021 = vpop.f32.mrb[0].mxu0
      %v1022 = vadd.f32 %v979, %v1021
      %v1023 = vpop.f32.mrb[0].mxu0
      %v1024 = vadd.f32 %v981, %v1023
      %1025 = vdwg.mxu0
      %v1102 = vunpack.c.l.b16 %v289
      %v1103 = vunpack.c.h.b16 %v289
      %v1104 = vunpack.c.l.b16 %v290
      %v1105 = vunpack.c.h.b16 %v290
      %v1106 = vunpack.c.l.b16 %v291
      %v1107 = vunpack.c.h.b16 %v291
      %v1108 = vunpack.c.l.b16 %v292
      %v1109 = vunpack.c.h.b16 %v292
      %v1110 = vunpack.c.l.b16 %v293
      %v1111 = vunpack.c.h.b16 %v293
      %v1112 = vunpack.c.l.b16 %v294
      %v1113 = vunpack.c.h.b16 %v294
      %v1114 = vunpack.c.l.b16 %v295
      %v1115 = vunpack.c.h.b16 %v295
      %v1116 = vunpack.c.l.b16 %v296
      %v1117 = vunpack.c.h.b16 %v296
      %v1118 = vunpack.c.l.b16 %v297
      %v1119 = vunpack.c.h.b16 %v297
      %v1120 = vunpack.c.l.b16 %v298
      %v1121 = vunpack.c.h.b16 %v298
      %v1122 = vunpack.c.l.b16 %v299
      %v1123 = vunpack.c.h.b16 %v299
      %v1124 = vunpack.c.l.b16 %v300
      %v1125 = vunpack.c.h.b16 %v300
      %v1126 = vunpack.c.l.b16 %v301
      %v1127 = vunpack.c.h.b16 %v301
      %v1128 = vunpack.c.l.b16 %v302
      %v1129 = vunpack.c.h.b16 %v302
      %v1130 = vunpack.c.l.b16 %v303
      %v1131 = vunpack.c.h.b16 %v303
      %v1132 = vunpack.c.l.b16 %v304
      %v1133 = vunpack.c.h.b16 %v304
      %v1134 = vunpack.c.l.b16 %v305
      %v1135 = vunpack.c.h.b16 %v305
      %v1136 = vunpack.c.l.b16 %v306
      %v1137 = vunpack.c.h.b16 %v306
      %v1138 = vunpack.c.l.b16 %v307
      %v1139 = vunpack.c.h.b16 %v307
      %v1140 = vunpack.c.l.b16 %v308
      %v1141 = vunpack.c.h.b16 %v308
      %v1142 = vunpack.c.l.b16 %v309
      %v1143 = vunpack.c.h.b16 %v309
      %v1144 = vunpack.c.l.b16 %v310
      %v1145 = vunpack.c.h.b16 %v310
      %v1146 = vunpack.c.l.b16 %v311
      %v1147 = vunpack.c.h.b16 %v311
      %v1148 = vunpack.c.l.b16 %v312
      %v1149 = vunpack.c.h.b16 %v312
      %v1150 = vunpack.c.l.b16 %v313
      %v1151 = vunpack.c.h.b16 %v313
      %v1152 = vunpack.c.l.b16 %v314
      %v1153 = vunpack.c.h.b16 %v314
      %v1154 = vunpack.c.l.b16 %v315
      %v1155 = vunpack.c.h.b16 %v315
      %v1156 = vunpack.c.l.b16 %v316
      %v1157 = vunpack.c.h.b16 %v316
      %v1158 = vunpack.c.l.b16 %v317
      %v1159 = vunpack.c.h.b16 %v317
      %v1160 = vunpack.c.l.b16 %v318
      %v1161 = vunpack.c.h.b16 %v318
      %v1162 = vunpack.c.l.b16 %v319
      %v1163 = vunpack.c.h.b16 %v319
      %v1164 = vunpack.c.l.b16 %v320
      %v1165 = vunpack.c.h.b16 %v320
      %v1166 = vunpack.c.l.b16 %v321
      %v1167 = vunpack.c.h.b16 %v321
      %v1168 = vunpack.c.l.b16 %v322
      %v1169 = vunpack.c.h.b16 %v322
      %v1170 = vunpack.c.l.b16 %v323
      %v1171 = vunpack.c.h.b16 %v323
      %v1172 = vunpack.c.l.b16 %v324
      %v1173 = vunpack.c.h.b16 %v324
      %v1174 = vunpack.c.l.b16 %v325
      %v1175 = vunpack.c.h.b16 %v325
      %v1176 = vunpack.c.l.b16 %v326
      %v1177 = vunpack.c.h.b16 %v326
      %v1178 = vunpack.c.l.b16 %v327
      %v1179 = vunpack.c.h.b16 %v327
      %v1180 = vunpack.c.l.b16 %v328
      %v1181 = vunpack.c.h.b16 %v328
      %v1182 = vunpack.c.l.b16 %v329
      %v1183 = vunpack.c.h.b16 %v329
      %v1184 = vunpack.c.l.b16 %v330
      %v1185 = vunpack.c.h.b16 %v330
      %v1186 = vunpack.c.l.b16 %v331
      %v1187 = vunpack.c.h.b16 %v331
      %v1188 = vunpack.c.l.b16 %v332
      %v1189 = vunpack.c.h.b16 %v332
      %v1190 = vunpack.c.l.b16 %v333
      %v1191 = vunpack.c.h.b16 %v333
      %v1192 = vunpack.c.l.b16 %v334
      %v1193 = vunpack.c.h.b16 %v334
      %v1194 = vunpack.c.l.b16 %v335
      %v1195 = vunpack.c.h.b16 %v335
      %v1196 = vunpack.c.l.b16 %v336
      %v1197 = vunpack.c.h.b16 %v336
      %v1198 = vunpack.c.l.b16 %v337
      %v1199 = vunpack.c.h.b16 %v337
      %v1200 = vunpack.c.l.b16 %v338
      %v1201 = vunpack.c.h.b16 %v338
      %v1202 = vunpack.c.l.b16 %v339
      %v1203 = vunpack.c.h.b16 %v339
      %v1204 = vunpack.c.l.b16 %v340
      %v1205 = vunpack.c.h.b16 %v340
      %v1206 = vunpack.c.l.b16 %v341
      %v1207 = vunpack.c.h.b16 %v341
      %v1208 = vunpack.c.l.b16 %v342
      %v1209 = vunpack.c.h.b16 %v342
      %v1210 = vunpack.c.l.b16 %v343
      %v1211 = vunpack.c.h.b16 %v343
      %v1212 = vunpack.c.l.b16 %v344
      %v1213 = vunpack.c.h.b16 %v344
      %v1214 = vunpack.c.l.b16 %v345
      %v1215 = vunpack.c.h.b16 %v345
      %v1216 = vunpack.c.l.b16 %v346
      %v1217 = vunpack.c.h.b16 %v346
      %v1218 = vunpack.c.l.b16 %v347
      %v1219 = vunpack.c.h.b16 %v347
      %v1220 = vunpack.c.l.b16 %v348
      %v1221 = vunpack.c.h.b16 %v348
      %v1222 = vunpack.c.l.b16 %v349
      %v1223 = vunpack.c.h.b16 %v349
      %v1224 = vunpack.c.l.b16 %v350
      %v1225 = vunpack.c.h.b16 %v350
      %v1226 = vunpack.c.l.b16 %v351
      %v1227 = vunpack.c.h.b16 %v351
      %v1228 = vunpack.c.l.b16 %v352
      %v1229 = vunpack.c.h.b16 %v352
      %v1230 = vunpack.c.l.b16 %v353
      %v1231 = vunpack.c.h.b16 %v353
      %v1232 = vunpack.c.l.b16 %v354
      %v1233 = vunpack.c.h.b16 %v354
      %v1234 = vunpack.c.l.b16 %v355
      %v1235 = vunpack.c.h.b16 %v355
      %v1236 = vunpack.c.l.b16 %v356
      %v1237 = vunpack.c.h.b16 %v356
      %v1238 = vunpack.c.l.b16 %v357
      %v1239 = vunpack.c.h.b16 %v357
      %v1240 = vunpack.c.l.b16 %v358
      %v1241 = vunpack.c.h.b16 %v358
      %v1242 = vunpack.c.l.b16 %v359
      %v1243 = vunpack.c.h.b16 %v359
      %v1244 = vunpack.c.l.b16 %v360
      %v1245 = vunpack.c.h.b16 %v360
      %v1246 = vpack.c.b16 %v1104, %v1102
      %v1247 = vpack.c.b16 %v1105, %v1103
      %v1248 = vpack.c.b16 %v1108, %v1106
      %v1249 = vpack.c.b16 %v1109, %v1107
      %v1250 = vpack.c.b16 %v1112, %v1110
      %v1251 = vpack.c.b16 %v1113, %v1111
      %v1252 = vpack.c.b16 %v1116, %v1114
      %v1253 = vpack.c.b16 %v1117, %v1115
      %v1254 = vpack.c.b16 %v1120, %v1118
      %v1255 = vpack.c.b16 %v1121, %v1119
      %v1256 = vpack.c.b16 %v1124, %v1122
      %v1257 = vpack.c.b16 %v1125, %v1123
      %v1258 = vpack.c.b16 %v1128, %v1126
      %v1259 = vpack.c.b16 %v1129, %v1127
      %v1260 = vpack.c.b16 %v1132, %v1130
      %v1261 = vpack.c.b16 %v1133, %v1131
      %v1262 = vpack.c.b16 %v1136, %v1134
      %v1263 = vpack.c.b16 %v1137, %v1135
      %v1264 = vpack.c.b16 %v1140, %v1138
      %v1265 = vpack.c.b16 %v1141, %v1139
      %v1266 = vpack.c.b16 %v1144, %v1142
      %v1267 = vpack.c.b16 %v1145, %v1143
      %v1268 = vpack.c.b16 %v1148, %v1146
      %v1269 = vpack.c.b16 %v1149, %v1147
      %v1270 = vpack.c.b16 %v1152, %v1150
      %v1271 = vpack.c.b16 %v1153, %v1151
      %v1272 = vpack.c.b16 %v1156, %v1154
      %v1273 = vpack.c.b16 %v1157, %v1155
      %v1274 = vpack.c.b16 %v1160, %v1158
      %v1275 = vpack.c.b16 %v1161, %v1159
      %v1276 = vpack.c.b16 %v1164, %v1162
      %v1277 = vpack.c.b16 %v1165, %v1163
      %v1278 = vpack.c.b16 %v1168, %v1166
      %v1279 = vpack.c.b16 %v1169, %v1167
      %v1280 = vpack.c.b16 %v1172, %v1170
      %v1281 = vpack.c.b16 %v1173, %v1171
      %v1282 = vpack.c.b16 %v1176, %v1174
      %v1283 = vpack.c.b16 %v1177, %v1175
      %v1284 = vpack.c.b16 %v1180, %v1178
      %v1285 = vpack.c.b16 %v1181, %v1179
      %v1286 = vpack.c.b16 %v1184, %v1182
      %v1287 = vpack.c.b16 %v1185, %v1183
      %v1288 = vpack.c.b16 %v1188, %v1186
      %v1289 = vpack.c.b16 %v1189, %v1187
      %v1290 = vpack.c.b16 %v1192, %v1190
      %v1291 = vpack.c.b16 %v1193, %v1191
      %v1292 = vpack.c.b16 %v1196, %v1194
      %v1293 = vpack.c.b16 %v1197, %v1195
      %v1294 = vpack.c.b16 %v1200, %v1198
      %v1295 = vpack.c.b16 %v1201, %v1199
      %v1296 = vpack.c.b16 %v1204, %v1202
      %v1297 = vpack.c.b16 %v1205, %v1203
      %v1298 = vpack.c.b16 %v1208, %v1206
      %v1299 = vpack.c.b16 %v1209, %v1207
      %v1300 = vpack.c.b16 %v1212, %v1210
      %v1301 = vpack.c.b16 %v1213, %v1211
      %v1302 = vpack.c.b16 %v1216, %v1214
      %v1303 = vpack.c.b16 %v1217, %v1215
      %v1304 = vpack.c.b16 %v1220, %v1218
      %v1305 = vpack.c.b16 %v1221, %v1219
      %v1306 = vpack.c.b16 %v1224, %v1222
      %v1307 = vpack.c.b16 %v1225, %v1223
      %v1308 = vpack.c.b16 %v1228, %v1226
      %v1309 = vpack.c.b16 %v1229, %v1227
      %v1310 = vpack.c.b16 %v1232, %v1230
      %v1311 = vpack.c.b16 %v1233, %v1231
      %v1312 = vpack.c.b16 %v1236, %v1234
      %v1313 = vpack.c.b16 %v1237, %v1235
      %v1314 = vpack.c.b16 %v1240, %v1238
      %v1315 = vpack.c.b16 %v1241, %v1239
      %v1316 = vpack.c.b16 %v1244, %v1242
      %v1317 = vpack.c.b16 %v1245, %v1243
      %v1390 = vsel %vm893, %v462, 0
      %1392 = vmatprep.subr.bf16.mxu0 %v1247
      %1393 = vmatpush1.bf16.msra.mxu0 %v1246
      %1394 = vmatprep.subr.bf16.mxu0 %v1249
      %1395 = vmatpush1.bf16.msra.mxu0 %v1248
      %1396 = vmatprep.subr.bf16.mxu0 %v1251
      %1397 = vmatpush1.bf16.msra.mxu0 %v1250
      %1398 = vmatprep.subr.bf16.mxu0 %v1253
      %1399 = vmatpush1.bf16.msra.mxu0 %v1252
      %1400 = vmatprep.subr.bf16.mxu0 %v1255
      %1401 = vmatpush1.bf16.msra.mxu0 %v1254
      %1402 = vmatprep.subr.bf16.mxu0 %v1257
      %1403 = vmatpush1.bf16.msra.mxu0 %v1256
      %1404 = vmatprep.subr.bf16.mxu0 %v1259
      %1405 = vmatpush1.bf16.msra.mxu0 %v1258
      %1406 = vmatprep.subr.bf16.mxu0 %v1261
      %1407 = vmatpush1.bf16.msra.mxu0 %v1260
      %1408 = vmatprep.subr.bf16.mxu0 %v1263
      %1409 = vmatpush1.bf16.msra.mxu0 %v1262
      %1410 = vmatprep.subr.bf16.mxu0 %v1265
      %1411 = vmatpush1.bf16.msra.mxu0 %v1264
      %1412 = vmatprep.subr.bf16.mxu0 %v1267
      %1413 = vmatpush1.bf16.msra.mxu0 %v1266
      %1414 = vmatprep.subr.bf16.mxu0 %v1269
      %1415 = vmatpush1.bf16.msra.mxu0 %v1268
      %1416 = vmatprep.subr.bf16.mxu0 %v1271
      %1417 = vmatpush1.bf16.msra.mxu0 %v1270
      %1418 = vmatprep.subr.bf16.mxu0 %v1273
      %1419 = vmatpush1.bf16.msra.mxu0 %v1272
      %1420 = vmatprep.subr.bf16.mxu0 %v1275
      %1421 = vmatpush1.bf16.msra.mxu0 %v1274
      %1422 = vmatprep.subr.bf16.mxu0 %v1277
      %1423 = vmatpush1.bf16.msra.mxu0 %v1276
      %1424 = vmatprep.mubr.bf16.mxu0 %v459
      %1425 = vmatmul.mubr.bf16.gmra.mrb[0].mxu0 %v458
      %v1426 = vpop.f32.mrb[0].mxu0
      %v1427 = vadd.f32 %v1018, %v1426
      %v1428 = vpop.f32.mrb[0].mxu0
      %v1429 = vadd.f32 %v1020, %v1428
      %v1430 = vpop.f32.mrb[0].mxu0
      %v1431 = vadd.f32 %v1022, %v1430
      %v1432 = vpop.f32.mrb[0].mxu0
      %v1433 = vadd.f32 %v1024, %v1432
      %1434 = vdwg.mxu0
      %1435 = vmatprep.subr.bf16.mxu0 %v1279
      %1436 = vmatpush1.bf16.msra.mxu0 %v1278
      %1437 = vmatprep.subr.bf16.mxu0 %v1281
      %1438 = vmatpush1.bf16.msra.mxu0 %v1280
      %1439 = vmatprep.subr.bf16.mxu0 %v1283
      %1440 = vmatpush1.bf16.msra.mxu0 %v1282
      %1441 = vmatprep.subr.bf16.mxu0 %v1285
      %1442 = vmatpush1.bf16.msra.mxu0 %v1284
      %1443 = vmatprep.subr.bf16.mxu0 %v1287
      %1444 = vmatpush1.bf16.msra.mxu0 %v1286
      %1445 = vmatprep.subr.bf16.mxu0 %v1289
      %1446 = vmatpush1.bf16.msra.mxu0 %v1288
      %1447 = vmatprep.subr.bf16.mxu0 %v1291
      %1448 = vmatpush1.bf16.msra.mxu0 %v1290
      %1449 = vmatprep.subr.bf16.mxu0 %v1293
      %1450 = vmatpush1.bf16.msra.mxu0 %v1292
      %1451 = vmatprep.subr.bf16.mxu0 %v1295
      %1452 = vmatpush1.bf16.msra.mxu0 %v1294
      %1453 = vmatprep.subr.bf16.mxu0 %v1297
      %1454 = vmatpush1.bf16.msra.mxu0 %v1296
      %1455 = vmatprep.subr.bf16.mxu0 %v1299
      %1456 = vmatpush1.bf16.msra.mxu0 %v1298
      %1457 = vmatprep.subr.bf16.mxu0 %v1301
      %1458 = vmatpush1.bf16.msra.mxu0 %v1300
      %1459 = vmatprep.subr.bf16.mxu0 %v1303
      %1460 = vmatpush1.bf16.msra.mxu0 %v1302
      %1461 = vmatprep.subr.bf16.mxu0 %v1305
      %1462 = vmatpush1.bf16.msra.mxu0 %v1304
      %1463 = vmatprep.subr.bf16.mxu0 %v1307
      %1464 = vmatpush1.bf16.msra.mxu0 %v1306
      %1465 = vmatprep.subr.bf16.mxu0 %v1309
      %1466 = vmatpush1.bf16.msra.mxu0 %v1308
      %1467 = vmatprep.mubr.bf16.mxu0 %v461
      %1468 = vmatmul.mubr.bf16.gmra.mrb[0].mxu0 %v460
      %v1469 = vpop.f32.mrb[0].mxu0
      %v1470 = vadd.f32 %v1427, %v1469
      %v1471 = vpop.f32.mrb[0].mxu0
      %v1472 = vadd.f32 %v1429, %v1471
      %v1473 = vpop.f32.mrb[0].mxu0
      %v1474 = vadd.f32 %v1431, %v1473
      %v1475 = vpop.f32.mrb[0].mxu0
      %v1476 = vadd.f32 %v1433, %v1475
      %1477 = vdwg.mxu0
      %1478 = vmatprep.subr.bf16.mxu0 %v1311
      %1479 = vmatpush1.bf16.msra.mxu0 %v1310
      %1480 = vmatprep.subr.bf16.mxu0 %v1313
      %1481 = vmatpush1.bf16.msra.mxu0 %v1312
      %1482 = vmatprep.subr.bf16.mxu0 %v1315
      %1483 = vmatpush1.bf16.msra.mxu0 %v1314
      %1484 = vmatprep.subr.bf16.mxu0 %v1317
      %1485 = vmatpush1.bf16.msra.mxu0 %v1316
      %1486 = vmatprep.subr.bf16.mxu0 0
      %1487 = vmatpush1.bf16.msra.mxu0 0
      %1488 = vmatprep.subr.bf16.mxu0 0
      %1489 = vmatpush1.bf16.msra.mxu0 0
      %1490 = vmatprep.subr.bf16.mxu0 0
      %1491 = vmatpush1.bf16.msra.mxu0 0
      %1492 = vmatprep.subr.bf16.mxu0 0
      %1493 = vmatpush1.bf16.msra.mxu0 0
      %1494 = vmatprep.subr.bf16.mxu0 0
      %1495 = vmatpush1.bf16.msra.mxu0 0
      %1496 = vmatprep.subr.bf16.mxu0 0
      %1497 = vmatpush1.bf16.msra.mxu0 0
      %1498 = vmatprep.subr.bf16.mxu0 0
      %1499 = vmatpush1.bf16.msra.mxu0 0
      %1500 = vmatprep.subr.bf16.mxu0 0
      %1501 = vmatpush1.bf16.msra.mxu0 0
      %1502 = vmatprep.subr.bf16.mxu0 0
      %1503 = vmatpush1.bf16.msra.mxu0 0
      %1504 = vmatprep.subr.bf16.mxu0 0
      %1505 = vmatpush1.bf16.msra.mxu0 0
      %1506 = vmatprep.subr.bf16.mxu0 0
      %1507 = vmatpush1.bf16.msra.mxu0 0
      %1508 = vmatprep.subr.bf16.mxu0 0
      %1509 = vmatpush1.bf16.msra.mxu0 0
      %1510 = vmatprep.mubr.bf16.mxu0 0
      %1511 = vmatmul.mubr.bf16.gmra.mrb[0].mxu0 %v1390
      %v1512 = vpop.f32.mrb[0].mxu0
      %v1513 = vadd.f32 %v1470, %v1512
      %v1514 = vpop.f32.mrb[0].mxu0
      %v1515 = vadd.f32 %v1472, %v1514
      %v1516 = vpop.f32.mrb[0].mxu0
      %v1517 = vadd.f32 %v1474, %v1516
      %v1518 = vpop.f32.mrb[0].mxu0
      %v1519 = vadd.f32 %v1476, %v1518
      %1520 = vdwg.mxu0
      %s1521 = scalar_lea.vmem %s1, 1152
      %v1522 = vld [vmem:[%s1521] sm:$0xff]
      %v1523 = vld [vmem:[%s1521 + $0x8] sm:$0xff]
      %v1524 = vld [vmem:[%s1521 + $0x10] sm:$0xff]
      %v1525 = vld [vmem:[%s1521 + $0x18] sm:$0xff]
      %v1526 = vld [vmem:[%s1521 + $0x20] sm:$0xff]
      %v1527 = vld [vmem:[%s1521 + $0x28] sm:$0xff]
      %v1528 = vld [vmem:[%s1521 + $0x30] sm:$0xff]
      %v1529 = vld [vmem:[%s1521 + $0x38] sm:$0xff]
      %v1530 = vld [vmem:[%s1521 + $0x40] sm:$0xff]
      %v1531 = vld [vmem:[%s1521 + $0x48] sm:$0xff]
      %v1532 = vld [vmem:[%s1521 + $0x50] sm:$0xff]
      %v1533 = vld [vmem:[%s1521 + $0x58] sm:$0xff]
      %v1534 = vld [vmem:[%s1521 + $0x60] sm:$0xff]
      %v1535 = vld [vmem:[%s1521 + $0x68] sm:$0xff]
      %v1536 = vld [vmem:[%s1521 + $0x70] sm:$0xff]
      %v1537 = vld [vmem:[%s1521 + $0x78] sm:$0xff]
      %v1538 = vld [vmem:[%s1521 + $0x80] sm:$0xff]
      %v1539 = vld [vmem:[%s1521 + $0x88] sm:$0xff]
      %v1540 = vld [vmem:[%s1521 + $0x90] sm:$0xff]
      %v1541 = vld [vmem:[%s1521 + $0x98] sm:$0xff]
      %v1542 = vld [vmem:[%s1521 + $0xa0] sm:$0xff]
      %v1543 = vld [vmem:[%s1521 + $0xa8] sm:$0xff]
      %v1544 = vld [vmem:[%s1521 + $0xb0] sm:$0xff]
      %v1545 = vld [vmem:[%s1521 + $0xb8] sm:$0xff]
      %v1546 = vld [vmem:[%s1521 + $0xc0] sm:$0xff]
      %v1547 = vld [vmem:[%s1521 + $0xc8] sm:$0xff]
      %v1548 = vld [vmem:[%s1521 + $0xd0] sm:$0xff]
      %v1549 = vld [vmem:[%s1521 + $0xd8] sm:$0xff]
      %v1550 = vld [vmem:[%s1521 + $0xe0] sm:$0xff]
      %v1551 = vld [vmem:[%s1521 + $0xe8] sm:$0xff]
      %v1552 = vld [vmem:[%s1521 + $0xf0] sm:$0xff]
      %v1553 = vld [vmem:[%s1521 + $0xf8] sm:$0xff]
      %v1554 = vld [vmem:[%s1521 + $0x100] sm:$0xff]
      %v1555 = vld [vmem:[%s1521 + $0x108] sm:$0xff]
      %v1556 = vld [vmem:[%s1521 + $0x110] sm:$0xff]
      %v1557 = vld [vmem:[%s1521 + $0x118] sm:$0xff]
      %v1558 = vld [vmem:[%s1521 + $0x120] sm:$0xff]
      %v1559 = vld [vmem:[%s1521 + $0x128] sm:$0xff]
      %v1560 = vld [vmem:[%s1521 + $0x130] sm:$0xff]
      %v1561 = vld [vmem:[%s1521 + $0x138] sm:$0xff]
      %v1562 = vld [vmem:[%s1521 + $0x140] sm:$0xff]
      %v1563 = vld [vmem:[%s1521 + $0x148] sm:$0xff]
      %v1564 = vld [vmem:[%s1521 + $0x150] sm:$0xff]
      %v1565 = vld [vmem:[%s1521 + $0x158] sm:$0xff]
      %v1566 = vld [vmem:[%s1521 + $0x160] sm:$0xff]
      %v1567 = vld [vmem:[%s1521 + $0x168] sm:$0xff]
      %v1568 = vld [vmem:[%s1521 + $0x170] sm:$0xff]
      %v1569 = vld [vmem:[%s1521 + $0x178] sm:$0xff]
      %v1570 = vld [vmem:[%s1521 + $0x180] sm:$0xff]
      %v1571 = vld [vmem:[%s1521 + $0x188] sm:$0xff]
      %v1572 = vld [vmem:[%s1521 + $0x190] sm:$0xff]
      %v1573 = vld [vmem:[%s1521 + $0x198] sm:$0xff]
      %v1574 = vld [vmem:[%s1521 + $0x1a0] sm:$0xff]
      %v1575 = vld [vmem:[%s1521 + $0x1a8] sm:$0xff]
      %v1576 = vld [vmem:[%s1521 + $0x1b0] sm:$0xff]
      %v1577 = vld [vmem:[%s1521 + $0x1b8] sm:$0xff]
      %v1578 = vld [vmem:[%s1521 + $0x1c0] sm:$0xff]
      %v1579 = vld [vmem:[%s1521 + $0x1c8] sm:$0xff]
      %v1580 = vld [vmem:[%s1521 + $0x1d0] sm:$0xff]
      %v1581 = vld [vmem:[%s1521 + $0x1d8] sm:$0xff]
      %v1582 = vld [vmem:[%s1521 + $0x1e0] sm:$0xff]
      %v1583 = vld [vmem:[%s1521 + $0x1e8] sm:$0xff]
      %v1584 = vld [vmem:[%s1521 + $0x1f0] sm:$0xff]
      %v1585 = vld [vmem:[%s1521 + $0x1f8] sm:$0xff]
      %v1586 = vld [vmem:[%s1521 + $0x200] sm:$0xff]
      %v1587 = vld [vmem:[%s1521 + $0x208] sm:$0xff]
      %v1588 = vld [vmem:[%s1521 + $0x210] sm:$0xff]
      %v1589 = vld [vmem:[%s1521 + $0x218] sm:$0xff]
      %v1590 = vld [vmem:[%s1521 + $0x220] sm:$0xff]
      %v1591 = vld [vmem:[%s1521 + $0x228] sm:$0xff]
      %v1592 = vld [vmem:[%s1521 + $0x230] sm:$0xff]
      %v1593 = vld [vmem:[%s1521 + $0x238] sm:$0xff]
      %vm1594 = vcmask 1046528
      %v1595 = vrot.slane %v458, 1
      %v1596 = vrot.slane %v463, 1
      %v1597 = vsel %vm1594, %v1595, %v1596
      %v1598 = vrot.slane %v459, 1
      %v1599 = vrot.slane %v464, 1
      %v1600 = vsel %vm1594, %v1598, %v1599
      %v1601 = vrot.slane %v460, 1
      %v1602 = vrot.slane %v465, 1
      %v1603 = vsel %vm1594, %v1601, %v1602
      %v1604 = vrot.slane %v461, 1
      %v1605 = vrot.slane %v466, 1
      %v1606 = vsel %vm1594, %v1604, %v1605
      %v1607 = vrot.slane %v462, 1
      %v1608 = vrot.slane %v467, 1
      %v1609 = vsel %vm1594, %v1607, %v1608
      %v1686 = vunpack.c.l.b16 %v1522
      %v1687 = vunpack.c.h.b16 %v1522
      %v1688 = vunpack.c.l.b16 %v1523
      %v1689 = vunpack.c.h.b16 %v1523
      %v1690 = vunpack.c.l.b16 %v1524
      %v1691 = vunpack.c.h.b16 %v1524
      %v1692 = vunpack.c.l.b16 %v1525
      %v1693 = vunpack.c.h.b16 %v1525
      %v1694 = vunpack.c.l.b16 %v1526
      %v1695 = vunpack.c.h.b16 %v1526
      %v1696 = vunpack.c.l.b16 %v1527
      %v1697 = vunpack.c.h.b16 %v1527
      %v1698 = vunpack.c.l.b16 %v1528
      %v1699 = vunpack.c.h.b16 %v1528
      %v1700 = vunpack.c.l.b16 %v1529
      %v1701 = vunpack.c.h.b16 %v1529
      %v1702 = vunpack.c.l.b16 %v1530
      %v1703 = vunpack.c.h.b16 %v1530
      %v1704 = vunpack.c.l.b16 %v1531
      %v1705 = vunpack.c.h.b16 %v1531
      %v1706 = vunpack.c.l.b16 %v1532
      %v1707 = vunpack.c.h.b16 %v1532
      %v1708 = vunpack.c.l.b16 %v1533
      %v1709 = vunpack.c.h.b16 %v1533
      %v1710 = vunpack.c.l.b16 %v1534
      %v1711 = vunpack.c.h.b16 %v1534
      %v1712 = vunpack.c.l.b16 %v1535
      %v1713 = vunpack.c.h.b16 %v1535
      %v1714 = vunpack.c.l.b16 %v1536
      %v1715 = vunpack.c.h.b16 %v1536
      %v1716 = vunpack.c.l.b16 %v1537
      %v1717 = vunpack.c.h.b16 %v1537
      %v1718 = vunpack.c.l.b16 %v1538
      %v1719 = vunpack.c.h.b16 %v1538
      %v1720 = vunpack.c.l.b16 %v1539
      %v1721 = vunpack.c.h.b16 %v1539
      %v1722 = vunpack.c.l.b16 %v1540
      %v1723 = vunpack.c.h.b16 %v1540
      %v1724 = vunpack.c.l.b16 %v1541
      %v1725 = vunpack.c.h.b16 %v1541
      %v1726 = vunpack.c.l.b16 %v1542
      %v1727 = vunpack.c.h.b16 %v1542
      %v1728 = vunpack.c.l.b16 %v1543
      %v1729 = vunpack.c.h.b16 %v1543
      %v1730 = vunpack.c.l.b16 %v1544
      %v1731 = vunpack.c.h.b16 %v1544
      %v1732 = vunpack.c.l.b16 %v1545
      %v1733 = vunpack.c.h.b16 %v1545
      %v1734 = vunpack.c.l.b16 %v1546
      %v1735 = vunpack.c.h.b16 %v1546
      %v1736 = vunpack.c.l.b16 %v1547
      %v1737 = vunpack.c.h.b16 %v1547
      %v1738 = vunpack.c.l.b16 %v1548
      %v1739 = vunpack.c.h.b16 %v1548
      %v1740 = vunpack.c.l.b16 %v1549
      %v1741 = vunpack.c.h.b16 %v1549
      %v1742 = vunpack.c.l.b16 %v1550
      %v1743 = vunpack.c.h.b16 %v1550
      %v1744 = vunpack.c.l.b16 %v1551
      %v1745 = vunpack.c.h.b16 %v1551
      %v1746 = vunpack.c.l.b16 %v1552
      %v1747 = vunpack.c.h.b16 %v1552
      %v1748 = vunpack.c.l.b16 %v1553
      %v1749 = vunpack.c.h.b16 %v1553
      %v1750 = vunpack.c.l.b16 %v1554
      %v1751 = vunpack.c.h.b16 %v1554
      %v1752 = vunpack.c.l.b16 %v1555
      %v1753 = vunpack.c.h.b16 %v1555
      %v1754 = vunpack.c.l.b16 %v1556
      %v1755 = vunpack.c.h.b16 %v1556
      %v1756 = vunpack.c.l.b16 %v1557
      %v1757 = vunpack.c.h.b16 %v1557
      %v1758 = vunpack.c.l.b16 %v1558
      %v1759 = vunpack.c.h.b16 %v1558
      %v1760 = vunpack.c.l.b16 %v1559
      %v1761 = vunpack.c.h.b16 %v1559
      %v1762 = vunpack.c.l.b16 %v1560
      %v1763 = vunpack.c.h.b16 %v1560
      %v1764 = vunpack.c.l.b16 %v1561
      %v1765 = vunpack.c.h.b16 %v1561
      %v1766 = vunpack.c.l.b16 %v1562
      %v1767 = vunpack.c.h.b16 %v1562
      %v1768 = vunpack.c.l.b16 %v1563
      %v1769 = vunpack.c.h.b16 %v1563
      %v1770 = vunpack.c.l.b16 %v1564
      %v1771 = vunpack.c.h.b16 %v1564
      %v1772 = vunpack.c.l.b16 %v1565
      %v1773 = vunpack.c.h.b16 %v1565
      %v1774 = vunpack.c.l.b16 %v1566
      %v1775 = vunpack.c.h.b16 %v1566
      %v1776 = vunpack.c.l.b16 %v1567
      %v1777 = vunpack.c.h.b16 %v1567
      %v1778 = vunpack.c.l.b16 %v1568
      %v1779 = vunpack.c.h.b16 %v1568
      %v1780 = vunpack.c.l.b16 %v1569
      %v1781 = vunpack.c.h.b16 %v1569
      %v1782 = vunpack.c.l.b16 %v1570
      %v1783 = vunpack.c.h.b16 %v1570
      %v1784 = vunpack.c.l.b16 %v1571
      %v1785 = vunpack.c.h.b16 %v1571
      %v1786 = vunpack.c.l.b16 %v1572
      %v1787 = vunpack.c.h.b16 %v1572
      %v1788 = vunpack.c.l.b16 %v1573
      %v1789 = vunpack.c.h.b16 %v1573
      %v1790 = vunpack.c.l.b16 %v1574
      %v1791 = vunpack.c.h.b16 %v1574
      %v1792 = vunpack.c.l.b16 %v1575
      %v1793 = vunpack.c.h.b16 %v1575
      %v1794 = vunpack.c.l.b16 %v1576
      %v1795 = vunpack.c.h.b16 %v1576
      %v1796 = vunpack.c.l.b16 %v1577
      %v1797 = vunpack.c.h.b16 %v1577
      %v1798 = vunpack.c.l.b16 %v1578
      %v1799 = vunpack.c.h.b16 %v1578
      %v1800 = vunpack.c.l.b16 %v1579
      %v1801 = vunpack.c.h.b16 %v1579
      %v1802 = vunpack.c.l.b16 %v1580
      %v1803 = vunpack.c.h.b16 %v1580
      %v1804 = vunpack.c.l.b16 %v1581
      %v1805 = vunpack.c.h.b16 %v1581
      %v1806 = vunpack.c.l.b16 %v1582
      %v1807 = vunpack.c.h.b16 %v1582
      %v1808 = vunpack.c.l.b16 %v1583
      %v1809 = vunpack.c.h.b16 %v1583
      %v1810 = vunpack.c.l.b16 %v1584
      %v1811 = vunpack.c.h.b16 %v1584
      %v1812 = vunpack.c.l.b16 %v1585
      %v1813 = vunpack.c.h.b16 %v1585
      %v1814 = vunpack.c.l.b16 %v1586
      %v1815 = vunpack.c.h.b16 %v1586
      %v1816 = vunpack.c.l.b16 %v1587
      %v1817 = vunpack.c.h.b16 %v1587
      %v1818 = vunpack.c.l.b16 %v1588
      %v1819 = vunpack.c.h.b16 %v1588
      %v1820 = vunpack.c.l.b16 %v1589
      %v1821 = vunpack.c.h.b16 %v1589
      %v1822 = vunpack.c.l.b16 %v1590
      %v1823 = vunpack.c.h.b16 %v1590
      %v1824 = vunpack.c.l.b16 %v1591
      %v1825 = vunpack.c.h.b16 %v1591
      %v1826 = vunpack.c.l.b16 %v1592
      %v1827 = vunpack.c.h.b16 %v1592
      %v1828 = vunpack.c.l.b16 %v1593
      %v1829 = vunpack.c.h.b16 %v1593
      %v1830 = vpack.c.b16 %v1688, %v1686
      %v1831 = vpack.c.b16 %v1689, %v1687
      %v1832 = vpack.c.b16 %v1692, %v1690
      %v1833 = vpack.c.b16 %v1693, %v1691
      %v1834 = vpack.c.b16 %v1696, %v1694
      %v1835 = vpack.c.b16 %v1697, %v1695
      %v1836 = vpack.c.b16 %v1700, %v1698
      %v1837 = vpack.c.b16 %v1701, %v1699
      %v1838 = vpack.c.b16 %v1704, %v1702
      %v1839 = vpack.c.b16 %v1705, %v1703
      %v1840 = vpack.c.b16 %v1708, %v1706
      %v1841 = vpack.c.b16 %v1709, %v1707
      %v1842 = vpack.c.b16 %v1712, %v1710
      %v1843 = vpack.c.b16 %v1713, %v1711
      %v1844 = vpack.c.b16 %v1716, %v1714
      %v1845 = vpack.c.b16 %v1717, %v1715
      %v1846 = vpack.c.b16 %v1720, %v1718
      %v1847 = vpack.c.b16 %v1721, %v1719
      %v1848 = vpack.c.b16 %v1724, %v1722
      %v1849 = vpack.c.b16 %v1725, %v1723
      %v1850 = vpack.c.b16 %v1728, %v1726
      %v1851 = vpack.c.b16 %v1729, %v1727
      %v1852 = vpack.c.b16 %v1732, %v1730
      %v1853 = vpack.c.b16 %v1733, %v1731
      %v1854 = vpack.c.b16 %v1736, %v1734
      %v1855 = vpack.c.b16 %v1737, %v1735
      %v1856 = vpack.c.b16 %v1740, %v1738
      %v1857 = vpack.c.b16 %v1741, %v1739
      %v1858 = vpack.c.b16 %v1744, %v1742
      %v1859 = vpack.c.b16 %v1745, %v1743
      %v1860 = vpack.c.b16 %v1748, %v1746
      %v1861 = vpack.c.b16 %v1749, %v1747
      %v1862 = vpack.c.b16 %v1752, %v1750
      %v1863 = vpack.c.b16 %v1753, %v1751
      %v1864 = vpack.c.b16 %v1756, %v1754
      %v1865 = vpack.c.b16 %v1757, %v1755
      %v1866 = vpack.c.b16 %v1760, %v1758
      %v1867 = vpack.c.b16 %v1761, %v1759
      %v1868 = vpack.c.b16 %v1764, %v1762
      %v1869 = vpack.c.b16 %v1765, %v1763
      %v1870 = vpack.c.b16 %v1768, %v1766
      %v1871 = vpack.c.b16 %v1769, %v1767
      %v1872 = vpack.c.b16 %v1772, %v1770
      %v1873 = vpack.c.b16 %v1773, %v1771
      %v1874 = vpack.c.b16 %v1776, %v1774
      %v1875 = vpack.c.b16 %v1777, %v1775
      %v1876 = vpack.c.b16 %v1780, %v1778
      %v1877 = vpack.c.b16 %v1781, %v1779
      %v1878 = vpack.c.b16 %v1784, %v1782
      %v1879 = vpack.c.b16 %v1785, %v1783
      %v1880 = vpack.c.b16 %v1788, %v1786
      %v1881 = vpack.c.b16 %v1789, %v1787
      %v1882 = vpack.c.b16 %v1792, %v1790
      %v1883 = vpack.c.b16 %v1793, %v1791
      %v1884 = vpack.c.b16 %v1796, %v1794
      %v1885 = vpack.c.b16 %v1797, %v1795
      %v1886 = vpack.c.b16 %v1800, %v1798
      %v1887 = vpack.c.b16 %v1801, %v1799
      %v1888 = vpack.c.b16 %v1804, %v1802
      %v1889 = vpack.c.b16 %v1805, %v1803
      %v1890 = vpack.c.b16 %v1808, %v1806
      %v1891 = vpack.c.b16 %v1809, %v1807
      %v1892 = vpack.c.b16 %v1812, %v1810
      %v1893 = vpack.c.b16 %v1813, %v1811
      %v1894 = vpack.c.b16 %v1816, %v1814
      %v1895 = vpack.c.b16 %v1817, %v1815
      %v1896 = vpack.c.b16 %v1820, %v1818
      %v1897 = vpack.c.b16 %v1821, %v1819
      %v1898 = vpack.c.b16 %v1824, %v1822
      %v1899 = vpack.c.b16 %v1825, %v1823
      %v1900 = vpack.c.b16 %v1828, %v1826
      %v1901 = vpack.c.b16 %v1829, %v1827
      %v1975 = vsel %vm893, %v1609, 0
      %1977 = vmatprep.subr.bf16.mxu0 %v1831
      %1978 = vmatpush1.bf16.msra.mxu0 %v1830
      %1979 = vmatprep.subr.bf16.mxu0 %v1833
      %1980 = vmatpush1.bf16.msra.mxu0 %v1832
      %1981 = vmatprep.subr.bf16.mxu0 %v1835
      %1982 = vmatpush1.bf16.msra.mxu0 %v1834
      %1983 = vmatprep.subr.bf16.mxu0 %v1837
      %1984 = vmatpush1.bf16.msra.mxu0 %v1836
      %1985 = vmatprep.subr.bf16.mxu0 %v1839
      %1986 = vmatpush1.bf16.msra.mxu0 %v1838
      %1987 = vmatprep.subr.bf16.mxu0 %v1841
      %1988 = vmatpush1.bf16.msra.mxu0 %v1840
      %1989 = vmatprep.subr.bf16.mxu0 %v1843
      %1990 = vmatpush1.bf16.msra.mxu0 %v1842
      %1991 = vmatprep.subr.bf16.mxu0 %v1845
      %1992 = vmatpush1.bf16.msra.mxu0 %v1844
      %1993 = vmatprep.subr.bf16.mxu0 %v1847
      %1994 = vmatpush1.bf16.msra.mxu0 %v1846
      %1995 = vmatprep.subr.bf16.mxu0 %v1849
      %1996 = vmatpush1.bf16.msra.mxu0 %v1848
      %1997 = vmatprep.subr.bf16.mxu0 %v1851
      %1998 = vmatpush1.bf16.msra.mxu0 %v1850
      %1999 = vmatprep.subr.bf16.mxu0 %v1853
      %2000 = vmatpush1.bf16.msra.mxu0 %v1852
      %2001 = vmatprep.subr.bf16.mxu0 %v1855
      %2002 = vmatpush1.bf16.msra.mxu0 %v1854
      %2003 = vmatprep.subr.bf16.mxu0 %v1857
      %2004 = vmatpush1.bf16.msra.mxu0 %v1856
      %2005 = vmatprep.subr.bf16.mxu0 %v1859
      %2006 = vmatpush1.bf16.msra.mxu0 %v1858
      %2007 = vmatprep.subr.bf16.mxu0 %v1861
      %2008 = vmatpush1.bf16.msra.mxu0 %v1860
      %2009 = vmatprep.mubr.bf16.mxu0 %v1600
      %2010 = vmatmul.mubr.bf16.gmra.mrb[0].mxu0 %v1597
      %v2011 = vpop.f32.mrb[0].mxu0
      %v2012 = vadd.f32 0.0, %v2011
      %v2013 = vpop.f32.mrb[0].mxu0
      %v2014 = vadd.f32 0.0, %v2013
      %v2015 = vpop.f32.mrb[0].mxu0
      %v2016 = vadd.f32 0.0, %v2015
      %v2017 = vpop.f32.mrb[0].mxu0
      %v2018 = vadd.f32 0.0, %v2017
      %2019 = vdwg.mxu0
      %2020 = vmatprep.subr.bf16.mxu0 %v1863
      %2021 = vmatpush1.bf16.msra.mxu0 %v1862
      %2022 = vmatprep.subr.bf16.mxu0 %v1865
      %2023 = vmatpush1.bf16.msra.mxu0 %v1864
      %2024 = vmatprep.subr.bf16.mxu0 %v1867
      %2025 = vmatpush1.bf16.msra.mxu0 %v1866
      %2026 = vmatprep.subr.bf16.mxu0 %v1869
      %2027 = vmatpush1.bf16.msra.mxu0 %v1868
      %2028 = vmatprep.subr.bf16.mxu0 %v1871
      %2029 = vmatpush1.bf16.msra.mxu0 %v1870
      %2030 = vmatprep.subr.bf16.mxu0 %v1873
      %2031 = vmatpush1.bf16.msra.mxu0 %v1872
      %2032 = vmatprep.subr.bf16.mxu0 %v1875
      %2033 = vmatpush1.bf16.msra.mxu0 %v1874
      %2034 = vmatprep.subr.bf16.mxu0 %v1877
      %2035 = vmatpush1.bf16.msra.mxu0 %v1876
      %2036 = vmatprep.subr.bf16.mxu0 %v1879
      %2037 = vmatpush1.bf16.msra.mxu0 %v1878
      %2038 = vmatprep.subr.bf16.mxu0 %v1881
      %2039 = vmatpush1.bf16.msra.mxu0 %v1880
      %2040 = vmatprep.subr.bf16.mxu0 %v1883
      %2041 = vmatpush1.bf16.msra.mxu0 %v1882
      %2042 = vmatprep.subr.bf16.mxu0 %v1885
      %2043 = vmatpush1.bf16.msra.mxu0 %v1884
      %2044 = vmatprep.subr.bf16.mxu0 %v1887
      %2045 = vmatpush1.bf16.msra.mxu0 %v1886
      %2046 = vmatprep.subr.bf16.mxu0 %v1889
      %2047 = vmatpush1.bf16.msra.mxu0 %v1888
      %2048 = vmatprep.subr.bf16.mxu0 %v1891
      %2049 = vmatpush1.bf16.msra.mxu0 %v1890
      %2050 = vmatprep.subr.bf16.mxu0 %v1893
      %2051 = vmatpush1.bf16.msra.mxu0 %v1892
      %2052 = vmatprep.mubr.bf16.mxu0 %v1606
      %2053 = vmatmul.mubr.bf16.gmra.mrb[0].mxu0 %v1603
      %v2054 = vpop.f32.mrb[0].mxu0
      %v2055 = vadd.f32 %v2012, %v2054
      %v2056 = vpop.f32.mrb[0].mxu0
      %v2057 = vadd.f32 %v2014, %v2056
      %v2058 = vpop.f32.mrb[0].mxu0
      %v2059 = vadd.f32 %v2016, %v2058
      %v2060 = vpop.f32.mrb[0].mxu0
      %v2061 = vadd.f32 %v2018, %v2060
      %2062 = vdwg.mxu0
      %2063 = vmatprep.subr.bf16.mxu0 %v1895
      %2064 = vmatpush1.bf16.msra.mxu0 %v1894
      %2065 = vmatprep.subr.bf16.mxu0 %v1897
      %2066 = vmatpush1.bf16.msra.mxu0 %v1896
      %2067 = vmatprep.subr.bf16.mxu0 %v1899
      %2068 = vmatpush1.bf16.msra.mxu0 %v1898
      %2069 = vmatprep.subr.bf16.mxu0 %v1901
      %2070 = vmatpush1.bf16.msra.mxu0 %v1900
      %2071 = vmatprep.subr.bf16.mxu0 0
      %2072 = vmatpush1.bf16.msra.mxu0 0
      %2073 = vmatprep.subr.bf16.mxu0 0
      %2074 = vmatpush1.bf16.msra.mxu0 0
      %2075 = vmatprep.subr.bf16.mxu0 0
      %2076 = vmatpush1.bf16.msra.mxu0 0
      %2077 = vmatprep.subr.bf16.mxu0 0
      %2078 = vmatpush1.bf16.msra.mxu0 0
      %2079 = vmatprep.subr.bf16.mxu0 0
      %2080 = vmatpush1.bf16.msra.mxu0 0
      %2081 = vmatprep.subr.bf16.mxu0 0
      %2082 = vmatpush1.bf16.msra.mxu0 0
      %2083 = vmatprep.subr.bf16.mxu0 0
      %2084 = vmatpush1.bf16.msra.mxu0 0
      %2085 = vmatprep.subr.bf16.mxu0 0
      %2086 = vmatpush1.bf16.msra.mxu0 0
      %2087 = vmatprep.subr.bf16.mxu0 0
      %2088 = vmatpush1.bf16.msra.mxu0 0
      %2089 = vmatprep.subr.bf16.mxu0 0
      %2090 = vmatpush1.bf16.msra.mxu0 0
      %2091 = vmatprep.subr.bf16.mxu0 0
      %2092 = vmatpush1.bf16.msra.mxu0 0
      %2093 = vmatprep.subr.bf16.mxu0 0
      %2094 = vmatpush1.bf16.msra.mxu0 0
      %2095 = vmatprep.mubr.bf16.mxu0 0
      %2096 = vmatmul.mubr.bf16.gmra.mrb[0].mxu0 %v1975
      %v2097 = vpop.f32.mrb[0].mxu0
      %v2098 = vadd.f32 %v2055, %v2097
      %v2099 = vpop.f32.mrb[0].mxu0
      %v2100 = vadd.f32 %v2057, %v2099
      %v2101 = vpop.f32.mrb[0].mxu0
      %v2102 = vadd.f32 %v2059, %v2101
      %v2103 = vpop.f32.mrb[0].mxu0
      %v2104 = vadd.f32 %v2061, %v2103
      %2105 = vdwg.mxu0
      %v2106 = vadd.f32 %v1513, %v2098
      %v2107 = vadd.f32 %v1515, %v2100
      %v2108 = vadd.f32 %v1517, %v2102
      %v2109 = vadd.f32 %v1519, %v2104
      %2110 = vst [vmem:[#allocation2] sm:$0xff] 0
      %vm2111 = vcmask 257024
      %2112 = vst.msk [vmem:[#allocation2 + $0x8] sm:$0xf] %vm2111, 0
      %2113 = vst [vmem:[#allocation2 + $0xc] sm:$0xff] 0
      %2114 = vst.msk [vmem:[#allocation2 + $0x14] sm:$0xf] %vm2111, 0
      %2115 = vst [vmem:[#allocation2 + $0x18] sm:$0x11] 0
      %vm2116 = vcmask 253952
      %2117 = vst.msk [vmem:[#allocation2 + $0x20] sm:$0x1] %vm2116, 0
      %v2118 = vld [vmem:[%s2] sm:$0x3]
      %v2120 = vlaneseq
      %v2121 = vshrl.u32 %v2120, 7
      %v2122 = vsub.s32 0, %v2121
      %v2123 = vrot.slane %v2118, %v2122
      %v2124 = vlaneseq
      %v2125 = vshrl.u32 %v2124, 7
      %v2126 = vsub.s32 1, %v2125
      %v2127 = vrot.slane %v2118, %v2126
      %v2130 = vmul.f32 %v2106, %v2123
      %v2131 = vmul.f32 %v2107, %v2127
      %v2132 = vmul.f32 %v2108, %v2123
      %v2133 = vmul.f32 %v2109, %v2127
      %v2134 = vld [vmem:[%s3] sm:$0x3]
      %v2136 = vlaneseq
      %v2137 = vshrl.u32 %v2136, 7
      %v2138 = vsub.s32 0, %v2137
      %v2139 = vrot.slane %v2134, %v2138
      %v2140 = vlaneseq
      %v2141 = vshrl.u32 %v2140, 7
      %v2142 = vsub.s32 1, %v2141
      %v2143 = vrot.slane %v2134, %v2142
      %v2146 = vadd.f32 %v2130, %v2139
      %v2147 = vadd.f32 %v2131, %v2143
      %v2148 = vadd.f32 %v2132, %v2139
      %v2149 = vadd.f32 %v2133, %v2143
      %v2150 = vmax.f32 %v2146, 0.0
      %v2151 = vmax.f32 %v2147, 0.0
      %v2152 = vmax.f32 %v2148, 0.0
      %v2153 = vmax.f32 %v2149, 0.0
      %v2154 = vpack.c.bf16 %v2152, %v2150
      %v2155 = vpack.c.bf16 %v2153, %v2151
      %v2158 = vunpack.c.l.b16 %v2154
      %v2159 = vunpack.c.l.b16 %v2155
      %v2160 = vunpack.c.h.b16 %v2154
      %v2161 = vunpack.c.h.b16 %v2155
      %v2162 = vpack.c.b16 %v2159, %v2158
      %v2163 = vpack.c.b16 %v2161, %v2160
      %vm2164 = vsmask.f32 256
      %vm2165 = vsmask.f32 4368
      %vm2166 = vmor %vm2164, %vm2165
      %v2168 = vshrl.u32 %v2162, 16
      %v2170 = vrot.slane %v2168, 7
      %v2171 = vshll.u32 %v2162, 16
      %v2173 = vor.u32 %v2170, %v2171
      %v2174 = vrot.slane %v2170, 4
      %v2176 = vshrl.u32 %v2163, 16
      %v2178 = vrot.slane %v2176, 7
      %v2179 = vshll.u32 %v2163, 16
      %v2181 = vor.u32 %v2178, %v2179
      %v2182 = vsel %vm2166, %v2174, %v2181
      %v2183 = vrot.slane %v2178, 4
      %2184 = vrot.lane.b32.xlu0 %v2173, 16
      %v2185 = vpop.permute.xlu0 %2184
      %2186 = vrot.lane.b32.xlu0 %v2182, 16
      %v2187 = vpop.permute.xlu0 %2186
      %2188 = vrot.lane.b32.xlu0 %v2183, 16
      %v2189 = vpop.permute.xlu0 %2188
      %v2190 = vrot.slane %v2185, 4
      %v2191 = vrot.slane %v2187, 4
      %v2192 = vrot.slane %v2189, 4
      %vm2193 = vcmask 130048
      %v2194 = vsel %vm2193, %v2190, %v2185
      %v2195 = vsel %vm2193, %v2191, %v2187
      %v2196 = vsel %vm2193, %v2192, %v2189
      %vm2203 = vcmask 1043584
      %vm2204 = vsmask.f32 7938
      %vm2205 = vmand %vm2203, %vm2204
      %vm2206 = vcmask 1047556
      %vm2207 = vsmask.f32 7954
      %vm2208 = vmand %vm2206, %vm2207
      %vm2209 = vmor %vm2208, %vm2205
      %v2210 = vld [vmem:[#allocation2] sm:$0xff]
      %v2211 = vsel %vm2209, %v2194, %v2210
      %2212 = vst [vmem:[#allocation2] sm:$0xff] %v2211
      %vm2213 = vcmask 125952
      %vm2214 = vmand %vm2213, %vm2204
      %v2215 = vld [vmem:[#allocation2 + $0x8] sm:$0xf]
      %v2216 = vsel %vm2214, %v2190, %v2215
      %2217 = vst [vmem:[#allocation2 + $0x8] sm:$0xf] %v2216
      %vm2218 = vcmask 1043584
      %vm2219 = vcmask 1047556
      %vm2220 = vmor %vm2219, %vm2218
      %2221 = vst.msk [vmem:[#allocation2 + $0xc] sm:$0xff] %vm2220, %v2195
      %vm2222 = vcmask 125952
      %2223 = vst.msk [vmem:[#allocation2 + $0x14] sm:$0xf] %vm2222, %v2191
      %vm2224 = vcmask 1040512
      %vm2225 = vmand %vm2224, %vm2164
      %vm2226 = vcmask 1044484
      %vm2227 = vsmask.f32 4352
      %vm2228 = vmand %vm2226, %vm2227
      %vm2229 = vmor %vm2228, %vm2225
      %v2230 = vld [vmem:[#allocation2 + $0x18] sm:$0x11]
      %v2231 = vsel %vm2229, %v2196, %v2230
      %2232 = vst [vmem:[#allocation2 + $0x18] sm:$0x11] %v2231
      %vm2233 = vcmask 122880
      %vm2234 = vmand %vm2233, %vm2164
      %v2235 = vld [vmem:[#allocation2 + $0x20] sm:$0x1]
      %v2236 = vsel %vm2234, %v2192, %v2235
      %2237 = vst [vmem:[#allocation2 + $0x20] sm:$0x1] %v2236
      %v2238 = vld [vmem:[#allocation2] sm:$0xff]
      %v2239 = vld [vmem:[#allocation2 + $0x8] sm:$0xf]
      %v2240 = vld [vmem:[#allocation2 + $0xc] sm:$0xff]
      %v2241 = vld [vmem:[#allocation2 + $0x14] sm:$0xf]
      %v2242 = vld [vmem:[#allocation2 + $0x18] sm:$0x11]
      %v2243 = vld [vmem:[#allocation2 + $0x20] sm:$0x1]
      %v2244 = vld [vmem:[%s4] sm:$0xff]
      %v2245 = vld [vmem:[%s4 + $0x8] sm:$0xff]
      %v2246 = vld [vmem:[%s4 + $0x10] sm:$0xff]
      %v2247 = vld [vmem:[%s4 + $0x18] sm:$0xff]
      %v2248 = vld [vmem:[%s4 + $0x20] sm:$0xff]
      %v2249 = vld [vmem:[%s4 + $0x28] sm:$0xff]
      %v2250 = vld [vmem:[%s4 + $0x30] sm:$0xff]
      %v2251 = vld [vmem:[%s4 + $0x38] sm:$0xff]
      %v2252 = vld [vmem:[%s4 + $0x40] sm:$0xff]
      %v2253 = vld [vmem:[%s4 + $0x48] sm:$0xff]
      %v2254 = vld [vmem:[%s4 + $0x50] sm:$0xff]
      %v2255 = vld [vmem:[%s4 + $0x58] sm:$0xff]
      %v2256 = vld [vmem:[%s4 + $0x60] sm:$0xff]
      %v2257 = vld [vmem:[%s4 + $0x68] sm:$0xff]
      %v2258 = vld [vmem:[%s4 + $0x70] sm:$0xff]
      %v2259 = vld [vmem:[%s4 + $0x78] sm:$0xff]
      %v2260 = vld [vmem:[%s4 + $0x80] sm:$0xff]
      %v2261 = vld [vmem:[%s4 + $0x88] sm:$0xff]
      %v2262 = vld [vmem:[%s4 + $0x90] sm:$0xff]
      %v2263 = vld [vmem:[%s4 + $0x98] sm:$0xff]
      %v2264 = vld [vmem:[%s4 + $0xa0] sm:$0xff]
      %v2265 = vld [vmem:[%s4 + $0xa8] sm:$0xff]
      %v2266 = vld [vmem:[%s4 + $0xb0] sm:$0xff]
      %v2267 = vld [vmem:[%s4 + $0xb8] sm:$0xff]
      %v2268 = vld [vmem:[%s4 + $0xc0] sm:$0xff]
      %v2269 = vld [vmem:[%s4 + $0xc8] sm:$0xff]
      %v2270 = vld [vmem:[%s4 + $0xd0] sm:$0xff]
      %v2271 = vld [vmem:[%s4 + $0xd8] sm:$0xff]
      %v2272 = vld [vmem:[%s4 + $0xe0] sm:$0xff]
      %v2273 = vld [vmem:[%s4 + $0xe8] sm:$0xff]
      %v2274 = vld [vmem:[%s4 + $0xf0] sm:$0xff]
      %v2275 = vld [vmem:[%s4 + $0xf8] sm:$0xff]
      %v2276 = vld [vmem:[%s4 + $0x100] sm:$0xff]
      %v2277 = vld [vmem:[%s4 + $0x108] sm:$0xff]
      %v2278 = vld [vmem:[%s4 + $0x110] sm:$0xff]
      %v2279 = vld [vmem:[%s4 + $0x118] sm:$0xff]
      %s2280 = scalar_lea.vmem %s4, 288
      %v2281 = vld [vmem:[%s2280] sm:$0xff]
      %v2282 = vld [vmem:[%s2280 + $0x8] sm:$0xff]
      %v2283 = vld [vmem:[%s2280 + $0x10] sm:$0xff]
      %v2284 = vld [vmem:[%s2280 + $0x18] sm:$0xff]
      %v2285 = vld [vmem:[%s2280 + $0x20] sm:$0xff]
      %v2286 = vld [vmem:[%s2280 + $0x28] sm:$0xff]
      %v2287 = vld [vmem:[%s2280 + $0x30] sm:$0xff]
      %v2288 = vld [vmem:[%s2280 + $0x38] sm:$0xff]
      %v2289 = vld [vmem:[%s2280 + $0x40] sm:$0xff]
      %v2290 = vld [vmem:[%s2280 + $0x48] sm:$0xff]
      %v2291 = vld [vmem:[%s2280 + $0x50] sm:$0xff]
      %v2292 = vld [vmem:[%s2280 + $0x58] sm:$0xff]
      %v2293 = vld [vmem:[%s2280 + $0x60] sm:$0xff]
      %v2294 = vld [vmem:[%s2280 + $0x68] sm:$0xff]
      %v2295 = vld [vmem:[%s2280 + $0x70] sm:$0xff]
      %v2296 = vld [vmem:[%s2280 + $0x78] sm:$0xff]
      %v2297 = vld [vmem:[%s2280 + $0x80] sm:$0xff]
      %v2298 = vld [vmem:[%s2280 + $0x88] sm:$0xff]
      %v2299 = vld [vmem:[%s2280 + $0x90] sm:$0xff]
      %v2300 = vld [vmem:[%s2280 + $0x98] sm:$0xff]
      %v2301 = vld [vmem:[%s2280 + $0xa0] sm:$0xff]
      %v2302 = vld [vmem:[%s2280 + $0xa8] sm:$0xff]
      %v2303 = vld [vmem:[%s2280 + $0xb0] sm:$0xff]
      %v2304 = vld [vmem:[%s2280 + $0xb8] sm:$0xff]
      %v2305 = vld [vmem:[%s2280 + $0xc0] sm:$0xff]
      %v2306 = vld [vmem:[%s2280 + $0xc8] sm:$0xff]
      %v2307 = vld [vmem:[%s2280 + $0xd0] sm:$0xff]
      %v2308 = vld [vmem:[%s2280 + $0xd8] sm:$0xff]
      %v2309 = vld [vmem:[%s2280 + $0xe0] sm:$0xff]
      %v2310 = vld [vmem:[%s2280 + $0xe8] sm:$0xff]
      %v2311 = vld [vmem:[%s2280 + $0xf0] sm:$0xff]
      %v2312 = vld [vmem:[%s2280 + $0xf8] sm:$0xff]
      %v2313 = vld [vmem:[%s2280 + $0x100] sm:$0xff]
      %v2314 = vld [vmem:[%s2280 + $0x108] sm:$0xff]
      %v2315 = vld [vmem:[%s2280 + $0x110] sm:$0xff]
      %v2316 = vld [vmem:[%s2280 + $0x118] sm:$0xff]
      %v2323 = vunpack.c.l.b16 %v2238
      %v2324 = vunpack.c.h.b16 %v2238
      %v2325 = vunpack.c.l.b16 %v2239
      %v2326 = vunpack.c.l.b16 %v2240
      %v2327 = vunpack.c.h.b16 %v2240
      %v2328 = vunpack.c.l.b16 %v2241
      %v2329 = vunpack.c.l.b16 %v2242
      %v2330 = vunpack.c.h.b16 %v2242
      %v2331 = vunpack.c.l.b16 %v2243
      %v2332 = vpack.c.b16 %v2326, %v2323
      %v2333 = vpack.c.b16 %v2327, %v2324
      %v2334 = vpack.c.b16 %v2328, %v2325
      %v2335 = vpack.c.b16 %v2329, %v2329
      %v2336 = vpack.c.b16 %v2330, %v2330
      %v2337 = vpack.c.b16 %v2331, %v2331
      %v2339 = vshrl.u32 %v2332, 16
      %v2341 = vshll.u32 %v2332, 16
      %v2343 = vrot.slane %v2341, 1
      %v2344 = vor.u32 %v2339, %v2343
      %v2346 = vshll.u32 %v2335, 16
      %v2348 = vrot.slane %v2346, 1
      %v2349 = vsel %vm468, %v2344, %v2348
      %v2351 = vshrl.u32 %v2333, 16
      %v2353 = vshll.u32 %v2333, 16
      %v2355 = vrot.slane %v2353, 1
      %v2356 = vor.u32 %v2351, %v2355
      %v2358 = vshll.u32 %v2336, 16
      %v2360 = vrot.slane %v2358, 1
      %v2361 = vsel %vm468, %v2356, %v2360
      %v2363 = vshrl.u32 %v2334, 16
      %v2365 = vshll.u32 %v2334, 16
      %v2367 = vrot.slane %v2365, 1
      %v2368 = vor.u32 %v2363, %v2367
      %v2370 = vshll.u32 %v2337, 16
      %v2372 = vrot.slane %v2370, 1
      %v2373 = vsel %vm468, %v2368, %v2372
      %v2412 = vunpack.c.l.b16 %v2281
      %v2413 = vunpack.c.h.b16 %v2281
      %v2414 = vunpack.c.l.b16 %v2282
      %v2415 = vunpack.c.h.b16 %v2282
      %v2416 = vunpack.c.l.b16 %v2283
      %v2417 = vunpack.c.h.b16 %v2283
      %v2418 = vunpack.c.l.b16 %v2284
      %v2419 = vunpack.c.h.b16 %v2284
      %v2420 = vunpack.c.l.b16 %v2285
      %v2421 = vunpack.c.h.b16 %v2285
      %v2422 = vunpack.c.l.b16 %v2286
      %v2423 = vunpack.c.h.b16 %v2286
      %v2424 = vunpack.c.l.b16 %v2287
      %v2425 = vunpack.c.h.b16 %v2287
      %v2426 = vunpack.c.l.b16 %v2288
      %v2427 = vunpack.c.h.b16 %v2288
      %v2428 = vunpack.c.l.b16 %v2289
      %v2429 = vunpack.c.h.b16 %v2289
      %v2430 = vunpack.c.l.b16 %v2290
      %v2431 = vunpack.c.h.b16 %v2290
      %v2432 = vunpack.c.l.b16 %v2291
      %v2433 = vunpack.c.h.b16 %v2291
      %v2434 = vunpack.c.l.b16 %v2292
      %v2435 = vunpack.c.h.b16 %v2292
      %v2436 = vunpack.c.l.b16 %v2293
      %v2437 = vunpack.c.h.b16 %v2293
      %v2438 = vunpack.c.l.b16 %v2294
      %v2439 = vunpack.c.h.b16 %v2294
      %v2440 = vunpack.c.l.b16 %v2295
      %v2441 = vunpack.c.h.b16 %v2295
      %v2442 = vunpack.c.l.b16 %v2296
      %v2443 = vunpack.c.h.b16 %v2296
      %v2444 = vunpack.c.l.b16 %v2297
      %v2445 = vunpack.c.h.b16 %v2297
      %v2446 = vunpack.c.l.b16 %v2298
      %v2447 = vunpack.c.h.b16 %v2298
      %v2448 = vunpack.c.l.b16 %v2299
      %v2449 = vunpack.c.h.b16 %v2299
      %v2450 = vunpack.c.l.b16 %v2300
      %v2451 = vunpack.c.h.b16 %v2300
      %v2452 = vunpack.c.l.b16 %v2301
      %v2453 = vunpack.c.h.b16 %v2301
      %v2454 = vunpack.c.l.b16 %v2302
      %v2455 = vunpack.c.h.b16 %v2302
      %v2456 = vunpack.c.l.b16 %v2303
      %v2457 = vunpack.c.h.b16 %v2303
      %v2458 = vunpack.c.l.b16 %v2304
      %v2459 = vunpack.c.h.b16 %v2304
      %v2460 = vunpack.c.l.b16 %v2305
      %v2461 = vunpack.c.h.b16 %v2305
      %v2462 = vunpack.c.l.b16 %v2306
      %v2463 = vunpack.c.h.b16 %v2306
      %v2464 = vunpack.c.l.b16 %v2307
      %v2465 = vunpack.c.h.b16 %v2307
      %v2466 = vunpack.c.l.b16 %v2308
      %v2467 = vunpack.c.h.b16 %v2308
      %v2468 = vunpack.c.l.b16 %v2309
      %v2469 = vunpack.c.h.b16 %v2309
      %v2470 = vunpack.c.l.b16 %v2310
      %v2471 = vunpack.c.h.b16 %v2310
      %v2472 = vunpack.c.l.b16 %v2311
      %v2473 = vunpack.c.h.b16 %v2311
      %v2474 = vunpack.c.l.b16 %v2312
      %v2475 = vunpack.c.h.b16 %v2312
      %v2476 = vunpack.c.l.b16 %v2313
      %v2477 = vunpack.c.h.b16 %v2313
      %v2478 = vunpack.c.l.b16 %v2314
      %v2479 = vunpack.c.h.b16 %v2314
      %v2480 = vunpack.c.l.b16 %v2315
      %v2481 = vunpack.c.h.b16 %v2315
      %v2482 = vunpack.c.l.b16 %v2316
      %v2483 = vunpack.c.h.b16 %v2316
      %v2484 = vpack.c.b16 %v2414, %v2412
      %v2485 = vpack.c.b16 %v2415, %v2413
      %v2486 = vpack.c.b16 %v2418, %v2416
      %v2487 = vpack.c.b16 %v2419, %v2417
      %v2488 = vpack.c.b16 %v2422, %v2420
      %v2489 = vpack.c.b16 %v2423, %v2421
      %v2490 = vpack.c.b16 %v2426, %v2424
      %v2491 = vpack.c.b16 %v2427, %v2425
      %v2492 = vpack.c.b16 %v2430, %v2428
      %v2493 = vpack.c.b16 %v2431, %v2429
      %v2494 = vpack.c.b16 %v2434, %v2432
      %v2495 = vpack.c.b16 %v2435, %v2433
      %v2496 = vpack.c.b16 %v2438, %v2436
      %v2497 = vpack.c.b16 %v2439, %v2437
      %v2498 = vpack.c.b16 %v2442, %v2440
      %v2499 = vpack.c.b16 %v2443, %v2441
      %v2500 = vpack.c.b16 %v2446, %v2444
      %v2501 = vpack.c.b16 %v2447, %v2445
      %v2502 = vpack.c.b16 %v2450, %v2448
      %v2503 = vpack.c.b16 %v2451, %v2449
      %v2504 = vpack.c.b16 %v2454, %v2452
      %v2505 = vpack.c.b16 %v2455, %v2453
      %v2506 = vpack.c.b16 %v2458, %v2456
      %v2507 = vpack.c.b16 %v2459, %v2457
      %v2508 = vpack.c.b16 %v2462, %v2460
      %v2509 = vpack.c.b16 %v2463, %v2461
      %v2510 = vpack.c.b16 %v2466, %v2464
      %v2511 = vpack.c.b16 %v2467, %v2465
      %v2512 = vpack.c.b16 %v2470, %v2468
      %v2513 = vpack.c.b16 %v2471, %v2469
      %v2514 = vpack.c.b16 %v2474, %v2472
      %v2515 = vpack.c.b16 %v2475, %v2473
      %v2516 = vpack.c.b16 %v2478, %v2476
      %v2517 = vpack.c.b16 %v2479, %v2477
      %v2518 = vpack.c.b16 %v2482, %v2480
      %v2519 = vpack.c.b16 %v2483, %v2481
      %vm2556 = vcmask 261120
      %v2558 = vsel %vm2556, %v2373, 0
      %2560 = vmatprep.subr.bf16.mxu0 %v2485
      %2561 = vmatpush1.bf16.msra.mxu0 %v2484
      %2562 = vmatprep.subr.bf16.mxu0 %v2487
      %2563 = vmatpush1.bf16.msra.mxu0 %v2486
      %2564 = vmatprep.subr.bf16.mxu0 %v2489
      %2565 = vmatpush1.bf16.msra.mxu0 %v2488
      %2566 = vmatprep.subr.bf16.mxu0 %v2491
      %2567 = vmatpush1.bf16.msra.mxu0 %v2490
      %2568 = vmatprep.subr.bf16.mxu0 %v2493
      %2569 = vmatpush1.bf16.msra.mxu0 %v2492
      %2570 = vmatprep.subr.bf16.mxu0 %v2495
      %2571 = vmatpush1.bf16.msra.mxu0 %v2494
      %2572 = vmatprep.subr.bf16.mxu0 %v2497
      %2573 = vmatpush1.bf16.msra.mxu0 %v2496
      %2574 = vmatprep.subr.bf16.mxu0 %v2499
      %2575 = vmatpush1.bf16.msra.mxu0 %v2498
      %2576 = vmatprep.subr.bf16.mxu0 %v2501
      %2577 = vmatpush1.bf16.msra.mxu0 %v2500
      %2578 = vmatprep.subr.bf16.mxu0 %v2503
      %2579 = vmatpush1.bf16.msra.mxu0 %v2502
      %2580 = vmatprep.subr.bf16.mxu0 %v2505
      %2581 = vmatpush1.bf16.msra.mxu0 %v2504
      %2582 = vmatprep.subr.bf16.mxu0 %v2507
      %2583 = vmatpush1.bf16.msra.mxu0 %v2506
      %2584 = vmatprep.subr.bf16.mxu0 %v2509
      %2585 = vmatpush1.bf16.msra.mxu0 %v2508
      %2586 = vmatprep.subr.bf16.mxu0 %v2511
      %2587 = vmatpush1.bf16.msra.mxu0 %v2510
      %2588 = vmatprep.subr.bf16.mxu0 %v2513
      %2589 = vmatpush1.bf16.msra.mxu0 %v2512
      %2590 = vmatprep.subr.bf16.mxu0 %v2515
      %2591 = vmatpush1.bf16.msra.mxu0 %v2514
      %2592 = vmatprep.mubr.bf16.mxu0 %v2361
      %2593 = vmatmul.mubr.bf16.gmra.mrb[0].mxu0 %v2349
      %v2594 = vpop.f32.mrb[0].mxu0
      %v2595 = vadd.f32 0.0, %v2594
      %v2596 = vpop.f32.mrb[0].mxu0
      %v2597 = vadd.f32 0.0, %v2596
      %v2598 = vpop.f32.mrb[0].mxu0
      %v2599 = vadd.f32 0.0, %v2598
      %v2600 = vpop.f32.mrb[0].mxu0
      %v2601 = vadd.f32 0.0, %v2600
      %2602 = vdwg.mxu0
      %2603 = vmatprep.subr.bf16.mxu0 %v2517
      %2604 = vmatpush1.bf16.msra.mxu0 %v2516
      %2605 = vmatprep.subr.bf16.mxu0 %v2519
      %2606 = vmatpush1.bf16.msra.mxu0 %v2518
      %2607 = vmatprep.subr.bf16.mxu0 0
      %2608 = vmatpush1.bf16.msra.mxu0 0
      %2609 = vmatprep.subr.bf16.mxu0 0
      %2610 = vmatpush1.bf16.msra.mxu0 0
      %2611 = vmatprep.subr.bf16.mxu0 0
      %2612 = vmatpush1.bf16.msra.mxu0 0
      %2613 = vmatprep.subr.bf16.mxu0 0
      %2614 = vmatpush1.bf16.msra.mxu0 0
      %2615 = vmatprep.subr.bf16.mxu0 0
      %2616 = vmatpush1.bf16.msra.mxu0 0
      %2617 = vmatprep.subr.bf16.mxu0 0
      %2618 = vmatpush1.bf16.msra.mxu0 0
      %2619 = vmatprep.subr.bf16.mxu0 0
      %2620 = vmatpush1.bf16.msra.mxu0 0
      %2621 = vmatprep.subr.bf16.mxu0 0
      %2622 = vmatpush1.bf16.msra.mxu0 0
      %2623 = vmatprep.subr.bf16.mxu0 0
      %2624 = vmatpush1.bf16.msra.mxu0 0
      %2625 = vmatprep.subr.bf16.mxu0 0
      %2626 = vmatpush1.bf16.msra.mxu0 0
      %2627 = vmatprep.subr.bf16.mxu0 0
      %2628 = vmatpush1.bf16.msra.mxu0 0
      %2629 = vmatprep.subr.bf16.mxu0 0
      %2630 = vmatpush1.bf16.msra.mxu0 0
      %2631 = vmatprep.subr.bf16.mxu0 0
      %2632 = vmatpush1.bf16.msra.mxu0 0
      %2633 = vmatprep.subr.bf16.mxu0 0
      %2634 = vmatpush1.bf16.msra.mxu0 0
      %2635 = vmatprep.mubr.bf16.mxu0 0
      %2636 = vmatmul.mubr.bf16.gmra.mrb[0].mxu0 %v2558
      %v2637 = vpop.f32.mrb[0].mxu0
      %v2638 = vadd.f32 %v2595, %v2637
      %v2639 = vpop.f32.mrb[0].mxu0
      %v2640 = vadd.f32 %v2597, %v2639
      %v2641 = vpop.f32.mrb[0].mxu0
      %v2642 = vadd.f32 %v2599, %v2641
      %v2643 = vpop.f32.mrb[0].mxu0
      %v2644 = vadd.f32 %v2601, %v2643
      %2645 = vdwg.mxu0
      %v2684 = vunpack.c.l.b16 %v2244
      %v2685 = vunpack.c.h.b16 %v2244
      %v2686 = vunpack.c.l.b16 %v2245
      %v2687 = vunpack.c.h.b16 %v2245
      %v2688 = vunpack.c.l.b16 %v2246
      %v2689 = vunpack.c.h.b16 %v2246
      %v2690 = vunpack.c.l.b16 %v2247
      %v2691 = vunpack.c.h.b16 %v2247
      %v2692 = vunpack.c.l.b16 %v2248
      %v2693 = vunpack.c.h.b16 %v2248
      %v2694 = vunpack.c.l.b16 %v2249
      %v2695 = vunpack.c.h.b16 %v2249
      %v2696 = vunpack.c.l.b16 %v2250
      %v2697 = vunpack.c.h.b16 %v2250
      %v2698 = vunpack.c.l.b16 %v2251
      %v2699 = vunpack.c.h.b16 %v2251
      %v2700 = vunpack.c.l.b16 %v2252
      %v2701 = vunpack.c.h.b16 %v2252
      %v2702 = vunpack.c.l.b16 %v2253
      %v2703 = vunpack.c.h.b16 %v2253
      %v2704 = vunpack.c.l.b16 %v2254
      %v2705 = vunpack.c.h.b16 %v2254
      %v2706 = vunpack.c.l.b16 %v2255
      %v2707 = vunpack.c.h.b16 %v2255
      %v2708 = vunpack.c.l.b16 %v2256
      %v2709 = vunpack.c.h.b16 %v2256
      %v2710 = vunpack.c.l.b16 %v2257
      %v2711 = vunpack.c.h.b16 %v2257
      %v2712 = vunpack.c.l.b16 %v2258
      %v2713 = vunpack.c.h.b16 %v2258
      %v2714 = vunpack.c.l.b16 %v2259
      %v2715 = vunpack.c.h.b16 %v2259
      %v2716 = vunpack.c.l.b16 %v2260
      %v2717 = vunpack.c.h.b16 %v2260
      %v2718 = vunpack.c.l.b16 %v2261
      %v2719 = vunpack.c.h.b16 %v2261
      %v2720 = vunpack.c.l.b16 %v2262
      %v2721 = vunpack.c.h.b16 %v2262
      %v2722 = vunpack.c.l.b16 %v2263
      %v2723 = vunpack.c.h.b16 %v2263
      %v2724 = vunpack.c.l.b16 %v2264
      %v2725 = vunpack.c.h.b16 %v2264
      %v2726 = vunpack.c.l.b16 %v2265
      %v2727 = vunpack.c.h.b16 %v2265
      %v2728 = vunpack.c.l.b16 %v2266
      %v2729 = vunpack.c.h.b16 %v2266
      %v2730 = vunpack.c.l.b16 %v2267
      %v2731 = vunpack.c.h.b16 %v2267
      %v2732 = vunpack.c.l.b16 %v2268
      %v2733 = vunpack.c.h.b16 %v2268
      %v2734 = vunpack.c.l.b16 %v2269
      %v2735 = vunpack.c.h.b16 %v2269
      %v2736 = vunpack.c.l.b16 %v2270
      %v2737 = vunpack.c.h.b16 %v2270
      %v2738 = vunpack.c.l.b16 %v2271
      %v2739 = vunpack.c.h.b16 %v2271
      %v2740 = vunpack.c.l.b16 %v2272
      %v2741 = vunpack.c.h.b16 %v2272
      %v2742 = vunpack.c.l.b16 %v2273
      %v2743 = vunpack.c.h.b16 %v2273
      %v2744 = vunpack.c.l.b16 %v2274
      %v2745 = vunpack.c.h.b16 %v2274
      %v2746 = vunpack.c.l.b16 %v2275
      %v2747 = vunpack.c.h.b16 %v2275
      %v2748 = vunpack.c.l.b16 %v2276
      %v2749 = vunpack.c.h.b16 %v2276
      %v2750 = vunpack.c.l.b16 %v2277
      %v2751 = vunpack.c.h.b16 %v2277
      %v2752 = vunpack.c.l.b16 %v2278
      %v2753 = vunpack.c.h.b16 %v2278
      %v2754 = vunpack.c.l.b16 %v2279
      %v2755 = vunpack.c.h.b16 %v2279
      %v2756 = vpack.c.b16 %v2686, %v2684
      %v2757 = vpack.c.b16 %v2687, %v2685
      %v2758 = vpack.c.b16 %v2690, %v2688
      %v2759 = vpack.c.b16 %v2691, %v2689
      %v2760 = vpack.c.b16 %v2694, %v2692
      %v2761 = vpack.c.b16 %v2695, %v2693
      %v2762 = vpack.c.b16 %v2698, %v2696
      %v2763 = vpack.c.b16 %v2699, %v2697
      %v2764 = vpack.c.b16 %v2702, %v2700
      %v2765 = vpack.c.b16 %v2703, %v2701
      %v2766 = vpack.c.b16 %v2706, %v2704
      %v2767 = vpack.c.b16 %v2707, %v2705
      %v2768 = vpack.c.b16 %v2710, %v2708
      %v2769 = vpack.c.b16 %v2711, %v2709
      %v2770 = vpack.c.b16 %v2714, %v2712
      %v2771 = vpack.c.b16 %v2715, %v2713
      %v2772 = vpack.c.b16 %v2718, %v2716
      %v2773 = vpack.c.b16 %v2719, %v2717
      %v2774 = vpack.c.b16 %v2722, %v2720
      %v2775 = vpack.c.b16 %v2723, %v2721
      %v2776 = vpack.c.b16 %v2726, %v2724
      %v2777 = vpack.c.b16 %v2727, %v2725
      %v2778 = vpack.c.b16 %v2730, %v2728
      %v2779 = vpack.c.b16 %v2731, %v2729
      %v2780 = vpack.c.b16 %v2734, %v2732
      %v2781 = vpack.c.b16 %v2735, %v2733
      %v2782 = vpack.c.b16 %v2738, %v2736
      %v2783 = vpack.c.b16 %v2739, %v2737
      %v2784 = vpack.c.b16 %v2742, %v2740
      %v2785 = vpack.c.b16 %v2743, %v2741
      %v2786 = vpack.c.b16 %v2746, %v2744
      %v2787 = vpack.c.b16 %v2747, %v2745
      %v2788 = vpack.c.b16 %v2750, %v2748
      %v2789 = vpack.c.b16 %v2751, %v2749
      %v2790 = vpack.c.b16 %v2754, %v2752
      %v2791 = vpack.c.b16 %v2755, %v2753
      %v2828 = vsel %vm2556, %v2334, 0
      %2830 = vmatprep.subr.bf16.mxu0 %v2757
      %2831 = vmatpush1.bf16.msra.mxu0 %v2756
      %2832 = vmatprep.subr.bf16.mxu0 %v2759
      %2833 = vmatpush1.bf16.msra.mxu0 %v2758
      %2834 = vmatprep.subr.bf16.mxu0 %v2761
      %2835 = vmatpush1.bf16.msra.mxu0 %v2760
      %2836 = vmatprep.subr.bf16.mxu0 %v2763
      %2837 = vmatpush1.bf16.msra.mxu0 %v2762
      %2838 = vmatprep.subr.bf16.mxu0 %v2765
      %2839 = vmatpush1.bf16.msra.mxu0 %v2764
      %2840 = vmatprep.subr.bf16.mxu0 %v2767
      %2841 = vmatpush1.bf16.msra.mxu0 %v2766
      %2842 = vmatprep.subr.bf16.mxu0 %v2769
      %2843 = vmatpush1.bf16.msra.mxu0 %v2768
      %2844 = vmatprep.subr.bf16.mxu0 %v2771
      %2845 = vmatpush1.bf16.msra.mxu0 %v2770
      %2846 = vmatprep.subr.bf16.mxu0 %v2773
      %2847 = vmatpush1.bf16.msra.mxu0 %v2772
      %2848 = vmatprep.subr.bf16.mxu0 %v2775
      %2849 = vmatpush1.bf16.msra.mxu0 %v2774
      %2850 = vmatprep.subr.bf16.mxu0 %v2777
      %2851 = vmatpush1.bf16.msra.mxu0 %v2776
      %2852 = vmatprep.subr.bf16.mxu0 %v2779
      %2853 = vmatpush1.bf16.msra.mxu0 %v2778
      %2854 = vmatprep.subr.bf16.mxu0 %v2781
      %2855 = vmatpush1.bf16.msra.mxu0 %v2780
      %2856 = vmatprep.subr.bf16.mxu0 %v2783
      %2857 = vmatpush1.bf16.msra.mxu0 %v2782
      %2858 = vmatprep.subr.bf16.mxu0 %v2785
      %2859 = vmatpush1.bf16.msra.mxu0 %v2784
      %2860 = vmatprep.subr.bf16.mxu0 %v2787
      %2861 = vmatpush1.bf16.msra.mxu0 %v2786
      %2862 = vmatprep.mubr.bf16.mxu0 %v2333
      %2863 = vmatmul.mubr.bf16.gmra.mrb[0].mxu0 %v2332
      %v2864 = vpop.f32.mrb[0].mxu0
      %v2865 = vadd.f32 %v2638, %v2864
      %v2866 = vpop.f32.mrb[0].mxu0
      %v2867 = vadd.f32 %v2640, %v2866
      %v2868 = vpop.f32.mrb[0].mxu0
      %v2869 = vadd.f32 %v2642, %v2868
      %v2870 = vpop.f32.mrb[0].mxu0
      %v2871 = vadd.f32 %v2644, %v2870
      %2872 = vdwg.mxu0
      %2873 = vmatprep.subr.bf16.mxu0 %v2789
      %2874 = vmatpush1.bf16.msra.mxu0 %v2788
      %2875 = vmatprep.subr.bf16.mxu0 %v2791
      %2876 = vmatpush1.bf16.msra.mxu0 %v2790
      %2877 = vmatprep.subr.bf16.mxu0 0
      %2878 = vmatpush1.bf16.msra.mxu0 0
      %2879 = vmatprep.subr.bf16.mxu0 0
      %2880 = vmatpush1.bf16.msra.mxu0 0
      %2881 = vmatprep.subr.bf16.mxu0 0
      %2882 = vmatpush1.bf16.msra.mxu0 0
      %2883 = vmatprep.subr.bf16.mxu0 0
      %2884 = vmatpush1.bf16.msra.mxu0 0
      %2885 = vmatprep.subr.bf16.mxu0 0
      %2886 = vmatpush1.bf16.msra.mxu0 0
      %2887 = vmatprep.subr.bf16.mxu0 0
      %2888 = vmatpush1.bf16.msra.mxu0 0
      %2889 = vmatprep.subr.bf16.mxu0 0
      %2890 = vmatpush1.bf16.msra.mxu0 0
      %2891 = vmatprep.subr.bf16.mxu0 0
      %2892 = vmatpush1.bf16.msra.mxu0 0
      %2893 = vmatprep.subr.bf16.mxu0 0
      %2894 = vmatpush1.bf16.msra.mxu0 0
      %2895 = vmatprep.subr.bf16.mxu0 0
      %2896 = vmatpush1.bf16.msra.mxu0 0
      %2897 = vmatprep.subr.bf16.mxu0 0
      %2898 = vmatpush1.bf16.msra.mxu0 0
      %2899 = vmatprep.subr.bf16.mxu0 0
      %2900 = vmatpush1.bf16.msra.mxu0 0
      %2901 = vmatprep.subr.bf16.mxu0 0
      %2902 = vmatpush1.bf16.msra.mxu0 0
      %2903 = vmatprep.subr.bf16.mxu0 0
      %2904 = vmatpush1.bf16.msra.mxu0 0
      %2905 = vmatprep.mubr.bf16.mxu0 0
      %2906 = vmatmul.mubr.bf16.gmra.mrb[0].mxu0 %v2828
      %v2907 = vpop.f32.mrb[0].mxu0
      %v2908 = vadd.f32 %v2865, %v2907
      %v2909 = vpop.f32.mrb[0].mxu0
      %v2910 = vadd.f32 %v2867, %v2909
      %v2911 = vpop.f32.mrb[0].mxu0
      %v2912 = vadd.f32 %v2869, %v2911
      %v2913 = vpop.f32.mrb[0].mxu0
      %v2914 = vadd.f32 %v2871, %v2913
      %2915 = vdwg.mxu0
      %s2916 = scalar_lea.vmem %s4, 576
      %v2917 = vld [vmem:[%s2916] sm:$0xff]
      %v2918 = vld [vmem:[%s2916 + $0x8] sm:$0xff]
      %v2919 = vld [vmem:[%s2916 + $0x10] sm:$0xff]
      %v2920 = vld [vmem:[%s2916 + $0x18] sm:$0xff]
      %v2921 = vld [vmem:[%s2916 + $0x20] sm:$0xff]
      %v2922 = vld [vmem:[%s2916 + $0x28] sm:$0xff]
      %v2923 = vld [vmem:[%s2916 + $0x30] sm:$0xff]
      %v2924 = vld [vmem:[%s2916 + $0x38] sm:$0xff]
      %v2925 = vld [vmem:[%s2916 + $0x40] sm:$0xff]
      %v2926 = vld [vmem:[%s2916 + $0x48] sm:$0xff]
      %v2927 = vld [vmem:[%s2916 + $0x50] sm:$0xff]
      %v2928 = vld [vmem:[%s2916 + $0x58] sm:$0xff]
      %v2929 = vld [vmem:[%s2916 + $0x60] sm:$0xff]
      %v2930 = vld [vmem:[%s2916 + $0x68] sm:$0xff]
      %v2931 = vld [vmem:[%s2916 + $0x70] sm:$0xff]
      %v2932 = vld [vmem:[%s2916 + $0x78] sm:$0xff]
      %v2933 = vld [vmem:[%s2916 + $0x80] sm:$0xff]
      %v2934 = vld [vmem:[%s2916 + $0x88] sm:$0xff]
      %v2935 = vld [vmem:[%s2916 + $0x90] sm:$0xff]
      %v2936 = vld [vmem:[%s2916 + $0x98] sm:$0xff]
      %v2937 = vld [vmem:[%s2916 + $0xa0] sm:$0xff]
      %v2938 = vld [vmem:[%s2916 + $0xa8] sm:$0xff]
      %v2939 = vld [vmem:[%s2916 + $0xb0] sm:$0xff]
      %v2940 = vld [vmem:[%s2916 + $0xb8] sm:$0xff]
      %v2941 = vld [vmem:[%s2916 + $0xc0] sm:$0xff]
      %v2942 = vld [vmem:[%s2916 + $0xc8] sm:$0xff]
      %v2943 = vld [vmem:[%s2916 + $0xd0] sm:$0xff]
      %v2944 = vld [vmem:[%s2916 + $0xd8] sm:$0xff]
      %v2945 = vld [vmem:[%s2916 + $0xe0] sm:$0xff]
      %v2946 = vld [vmem:[%s2916 + $0xe8] sm:$0xff]
      %v2947 = vld [vmem:[%s2916 + $0xf0] sm:$0xff]
      %v2948 = vld [vmem:[%s2916 + $0xf8] sm:$0xff]
      %v2949 = vld [vmem:[%s2916 + $0x100] sm:$0xff]
      %v2950 = vld [vmem:[%s2916 + $0x108] sm:$0xff]
      %v2951 = vld [vmem:[%s2916 + $0x110] sm:$0xff]
      %v2952 = vld [vmem:[%s2916 + $0x118] sm:$0xff]
      %v2953 = vrot.slane %v2332, 1
      %v2954 = vrot.slane %v2335, 1
      %v2955 = vsel %vm1594, %v2953, %v2954
      %v2956 = vrot.slane %v2333, 1
      %v2957 = vrot.slane %v2336, 1
      %v2958 = vsel %vm1594, %v2956, %v2957
      %v2959 = vrot.slane %v2334, 1
      %v2960 = vrot.slane %v2337, 1
      %v2961 = vsel %vm1594, %v2959, %v2960
      %v3000 = vunpack.c.l.b16 %v2917
      %v3001 = vunpack.c.h.b16 %v2917
      %v3002 = vunpack.c.l.b16 %v2918
      %v3003 = vunpack.c.h.b16 %v2918
      %v3004 = vunpack.c.l.b16 %v2919
      %v3005 = vunpack.c.h.b16 %v2919
      %v3006 = vunpack.c.l.b16 %v2920
      %v3007 = vunpack.c.h.b16 %v2920
      %v3008 = vunpack.c.l.b16 %v2921
      %v3009 = vunpack.c.h.b16 %v2921
      %v3010 = vunpack.c.l.b16 %v2922
      %v3011 = vunpack.c.h.b16 %v2922
      %v3012 = vunpack.c.l.b16 %v2923
      %v3013 = vunpack.c.h.b16 %v2923
      %v3014 = vunpack.c.l.b16 %v2924
      %v3015 = vunpack.c.h.b16 %v2924
      %v3016 = vunpack.c.l.b16 %v2925
      %v3017 = vunpack.c.h.b16 %v2925
      %v3018 = vunpack.c.l.b16 %v2926
      %v3019 = vunpack.c.h.b16 %v2926
      %v3020 = vunpack.c.l.b16 %v2927
      %v3021 = vunpack.c.h.b16 %v2927
      %v3022 = vunpack.c.l.b16 %v2928
      %v3023 = vunpack.c.h.b16 %v2928
      %v3024 = vunpack.c.l.b16 %v2929
      %v3025 = vunpack.c.h.b16 %v2929
      %v3026 = vunpack.c.l.b16 %v2930
      %v3027 = vunpack.c.h.b16 %v2930
      %v3028 = vunpack.c.l.b16 %v2931
      %v3029 = vunpack.c.h.b16 %v2931
      %v3030 = vunpack.c.l.b16 %v2932
      %v3031 = vunpack.c.h.b16 %v2932
      %v3032 = vunpack.c.l.b16 %v2933
      %v3033 = vunpack.c.h.b16 %v2933
      %v3034 = vunpack.c.l.b16 %v2934
      %v3035 = vunpack.c.h.b16 %v2934
      %v3036 = vunpack.c.l.b16 %v2935
      %v3037 = vunpack.c.h.b16 %v2935
      %v3038 = vunpack.c.l.b16 %v2936
      %v3039 = vunpack.c.h.b16 %v2936
      %v3040 = vunpack.c.l.b16 %v2937
      %v3041 = vunpack.c.h.b16 %v2937
      %v3042 = vunpack.c.l.b16 %v2938
      %v3043 = vunpack.c.h.b16 %v2938
      %v3044 = vunpack.c.l.b16 %v2939
      %v3045 = vunpack.c.h.b16 %v2939
      %v3046 = vunpack.c.l.b16 %v2940
      %v3047 = vunpack.c.h.b16 %v2940
      %v3048 = vunpack.c.l.b16 %v2941
      %v3049 = vunpack.c.h.b16 %v2941
      %v3050 = vunpack.c.l.b16 %v2942
      %v3051 = vunpack.c.h.b16 %v2942
      %v3052 = vunpack.c.l.b16 %v2943
      %v3053 = vunpack.c.h.b16 %v2943
      %v3054 = vunpack.c.l.b16 %v2944
      %v3055 = vunpack.c.h.b16 %v2944
      %v3056 = vunpack.c.l.b16 %v2945
      %v3057 = vunpack.c.h.b16 %v2945
      %v3058 = vunpack.c.l.b16 %v2946
      %v3059 = vunpack.c.h.b16 %v2946
      %v3060 = vunpack.c.l.b16 %v2947
      %v3061 = vunpack.c.h.b16 %v2947
      %v3062 = vunpack.c.l.b16 %v2948
      %v3063 = vunpack.c.h.b16 %v2948
      %v3064 = vunpack.c.l.b16 %v2949
      %v3065 = vunpack.c.h.b16 %v2949
      %v3066 = vunpack.c.l.b16 %v2950
      %v3067 = vunpack.c.h.b16 %v2950
      %v3068 = vunpack.c.l.b16 %v2951
      %v3069 = vunpack.c.h.b16 %v2951
      %v3070 = vunpack.c.l.b16 %v2952
      %v3071 = vunpack.c.h.b16 %v2952
      %v3072 = vpack.c.b16 %v3002, %v3000
      %v3073 = vpack.c.b16 %v3003, %v3001
      %v3074 = vpack.c.b16 %v3006, %v3004
      %v3075 = vpack.c.b16 %v3007, %v3005
      %v3076 = vpack.c.b16 %v3010, %v3008
      %v3077 = vpack.c.b16 %v3011, %v3009
      %v3078 = vpack.c.b16 %v3014, %v3012
      %v3079 = vpack.c.b16 %v3015, %v3013
      %v3080 = vpack.c.b16 %v3018, %v3016
      %v3081 = vpack.c.b16 %v3019, %v3017
      %v3082 = vpack.c.b16 %v3022, %v3020
      %v3083 = vpack.c.b16 %v3023, %v3021
      %v3084 = vpack.c.b16 %v3026, %v3024
      %v3085 = vpack.c.b16 %v3027, %v3025
      %v3086 = vpack.c.b16 %v3030, %v3028
      %v3087 = vpack.c.b16 %v3031, %v3029
      %v3088 = vpack.c.b16 %v3034, %v3032
      %v3089 = vpack.c.b16 %v3035, %v3033
      %v3090 = vpack.c.b16 %v3038, %v3036
      %v3091 = vpack.c.b16 %v3039, %v3037
      %v3092 = vpack.c.b16 %v3042, %v3040
      %v3093 = vpack.c.b16 %v3043, %v3041
      %v3094 = vpack.c.b16 %v3046, %v3044
      %v3095 = vpack.c.b16 %v3047, %v3045
      %v3096 = vpack.c.b16 %v3050, %v3048
      %v3097 = vpack.c.b16 %v3051, %v3049
      %v3098 = vpack.c.b16 %v3054, %v3052
      %v3099 = vpack.c.b16 %v3055, %v3053
      %v3100 = vpack.c.b16 %v3058, %v3056
      %v3101 = vpack.c.b16 %v3059, %v3057
      %v3102 = vpack.c.b16 %v3062, %v3060
      %v3103 = vpack.c.b16 %v3063, %v3061
      %v3104 = vpack.c.b16 %v3066, %v3064
      %v3105 = vpack.c.b16 %v3067, %v3065
      %v3106 = vpack.c.b16 %v3070, %v3068
      %v3107 = vpack.c.b16 %v3071, %v3069
      %v3145 = vsel %vm2556, %v2961, 0
      %3147 = vmatprep.subr.bf16.mxu0 %v3073
      %3148 = vmatpush1.bf16.msra.mxu0 %v3072
      %3149 = vmatprep.subr.bf16.mxu0 %v3075
      %3150 = vmatpush1.bf16.msra.mxu0 %v3074
      %3151 = vmatprep.subr.bf16.mxu0 %v3077
      %3152 = vmatpush1.bf16.msra.mxu0 %v3076
      %3153 = vmatprep.subr.bf16.mxu0 %v3079
      %3154 = vmatpush1.bf16.msra.mxu0 %v3078
      %3155 = vmatprep.subr.bf16.mxu0 %v3081
      %3156 = vmatpush1.bf16.msra.mxu0 %v3080
      %3157 = vmatprep.subr.bf16.mxu0 %v3083
      %3158 = vmatpush1.bf16.msra.mxu0 %v3082
      %3159 = vmatprep.subr.bf16.mxu0 %v3085
      %3160 = vmatpush1.bf16.msra.mxu0 %v3084
      %3161 = vmatprep.subr.bf16.mxu0 %v3087
      %3162 = vmatpush1.bf16.msra.mxu0 %v3086
      %3163 = vmatprep.subr.bf16.mxu0 %v3089
      %3164 = vmatpush1.bf16.msra.mxu0 %v3088
      %3165 = vmatprep.subr.bf16.mxu0 %v3091
      %3166 = vmatpush1.bf16.msra.mxu0 %v3090
      %3167 = vmatprep.subr.bf16.mxu0 %v3093
      %3168 = vmatpush1.bf16.msra.mxu0 %v3092
      %3169 = vmatprep.subr.bf16.mxu0 %v3095
      %3170 = vmatpush1.bf16.msra.mxu0 %v3094
      %3171 = vmatprep.subr.bf16.mxu0 %v3097
      %3172 = vmatpush1.bf16.msra.mxu0 %v3096
      %3173 = vmatprep.subr.bf16.mxu0 %v3099
      %3174 = vmatpush1.bf16.msra.mxu0 %v3098
      %3175 = vmatprep.subr.bf16.mxu0 %v3101
      %3176 = vmatpush1.bf16.msra.mxu0 %v3100
      %3177 = vmatprep.subr.bf16.mxu0 %v3103
      %3178 = vmatpush1.bf16.msra.mxu0 %v3102
      %3179 = vmatprep.mubr.bf16.mxu0 %v2958
      %3180 = vmatmul.mubr.bf16.gmra.mrb[0].mxu0 %v2955
      %v3181 = vpop.f32.mrb[0].mxu0
      %v3182 = vadd.f32 0.0, %v3181
      %v3183 = vpop.f32.mrb[0].mxu0
      %v3184 = vadd.f32 0.0, %v3183
      %v3185 = vpop.f32.mrb[0].mxu0
      %v3186 = vadd.f32 0.0, %v3185
      %v3187 = vpop.f32.mrb[0].mxu0
      %v3188 = vadd.f32 0.0, %v3187
      %3189 = vdwg.mxu0
      %3190 = vmatprep.subr.bf16.mxu0 %v3105
      %3191 = vmatpush1.bf16.msra.mxu0 %v3104
      %3192 = vmatprep.subr.bf16.mxu0 %v3107
      %3193 = vmatpush1.bf16.msra.mxu0 %v3106
      %3194 = vmatprep.subr.bf16.mxu0 0
      %3195 = vmatpush1.bf16.msra.mxu0 0
      %3196 = vmatprep.subr.bf16.mxu0 0
      %3197 = vmatpush1.bf16.msra.mxu0 0
      %3198 = vmatprep.subr.bf16.mxu0 0
      %3199 = vmatpush1.bf16.msra.mxu0 0
      %3200 = vmatprep.subr.bf16.mxu0 0
      %3201 = vmatpush1.bf16.msra.mxu0 0
      %3202 = vmatprep.subr.bf16.mxu0 0
      %3203 = vmatpush1.bf16.msra.mxu0 0
      %3204 = vmatprep.subr.bf16.mxu0 0
      %3205 = vmatpush1.bf16.msra.mxu0 0
      %3206 = vmatprep.subr.bf16.mxu0 0
      %3207 = vmatpush1.bf16.msra.mxu0 0
      %3208 = vmatprep.subr.bf16.mxu0 0
      %3209 = vmatpush1.bf16.msra.mxu0 0
      %3210 = vmatprep.subr.bf16.mxu0 0
      %3211 = vmatpush1.bf16.msra.mxu0 0
      %3212 = vmatprep.subr.bf16.mxu0 0
      %3213 = vmatpush1.bf16.msra.mxu0 0
      %3214 = vmatprep.subr.bf16.mxu0 0
      %3215 = vmatpush1.bf16.msra.mxu0 0
      %3216 = vmatprep.subr.bf16.mxu0 0
      %3217 = vmatpush1.bf16.msra.mxu0 0
      %3218 = vmatprep.subr.bf16.mxu0 0
      %3219 = vmatpush1.bf16.msra.mxu0 0
      %3220 = vmatprep.subr.bf16.mxu0 0
      %3221 = vmatpush1.bf16.msra.mxu0 0
      %3222 = vmatprep.mubr.bf16.mxu0 0
      %3223 = vmatmul.mubr.bf16.gmra.mrb[0].mxu0 %v3145
      %v3224 = vpop.f32.mrb[0].mxu0
      %v3225 = vadd.f32 %v3182, %v3224
      %v3226 = vpop.f32.mrb[0].mxu0
      %v3227 = vadd.f32 %v3184, %v3226
      %v3228 = vpop.f32.mrb[0].mxu0
      %v3229 = vadd.f32 %v3186, %v3228
      %v3230 = vpop.f32.mrb[0].mxu0
      %v3231 = vadd.f32 %v3188, %v3230
      %3232 = vdwg.mxu0
      %v3233 = vadd.f32 %v2908, %v3225
      %v3234 = vadd.f32 %v2910, %v3227
      %v3235 = vadd.f32 %v2912, %v3229
      %v3236 = vadd.f32 %v2914, %v3231
      %v3237 = vld [vmem:[%s5] sm:$0x3]
      %v3239 = vlaneseq
      %v3240 = vshrl.u32 %v3239, 7
      %v3241 = vsub.s32 0, %v3240
      %v3242 = vrot.slane %v3237, %v3241
      %v3243 = vlaneseq
      %v3244 = vshrl.u32 %v3243, 7
      %v3245 = vsub.s32 1, %v3244
      %v3246 = vrot.slane %v3237, %v3245
      %v3249 = vmul.f32 %v3233, %v3242
      %v3250 = vmul.f32 %v3234, %v3246
      %v3251 = vmul.f32 %v3235, %v3242
      %v3252 = vmul.f32 %v3236, %v3246
      %v3253 = vld [vmem:[%s6] sm:$0x3]
      %v3255 = vlaneseq
      %v3256 = vshrl.u32 %v3255, 7
      %v3257 = vsub.s32 0, %v3256
      %v3258 = vrot.slane %v3253, %v3257
      %v3259 = vlaneseq
      %v3260 = vshrl.u32 %v3259, 7
      %v3261 = vsub.s32 1, %v3260
      %v3262 = vrot.slane %v3253, %v3261
      %v3265 = vadd.f32 %v3249, %v3258
      %v3266 = vadd.f32 %v3250, %v3262
      %v3267 = vadd.f32 %v3251, %v3258
      %v3268 = vadd.f32 %v3252, %v3262
      %v3269 = vmax.f32 %v3265, 0.0
      %v3270 = vmax.f32 %v3266, 0.0
      %v3271 = vmax.f32 %v3267, 0.0
      %v3272 = vmax.f32 %v3268, 0.0
      %v3273 = vpack.c.bf16 %v3271, %v3269
      %v3274 = vpack.c.bf16 %v3272, %v3270
      %v3277 = vunpack.c.l.b16 %v3273
      %v3278 = vunpack.c.l.b16 %v3274
      %v3279 = vunpack.c.h.b16 %v3273
      %v3280 = vunpack.c.h.b16 %v3274
      %v3281 = vpack.c.b16 %v3278, %v3277
      %v3282 = vpack.c.b16 %v3280, %v3279
      %3285 = vst [vmem:[%s278] sm:$0xff] %v3281
      %3286 = vst [vmem:[%s278 + $0x8] sm:$0xff] %v3282
      %p3287 = scmp.lt.s32.totalorder %s18, 1
      %s3288 = scalar_select %p3287, %s18, 1
      %s3289 = smul.addr %s3288, 4
      %s3290 = smul.addr %s3289, 4
      %s3291 = scalar_lea.vmem %s7, %s3290
      // Predicated region
      $region49: #{up_forward.1} parent=47 // pred_check
        %p3292 = pneg %p188
      $region50: #{up_forward.1} parent=47 // pred_check_branch
        %3294 = sbr.rel (%p3292) target = $region52
      $region51: #{up_forward.1} parent=47 // pred_region
        _
      $region52: #{up_forward.1} parent=47 // pred_fallthru
        _
    $region48: #{up_forward.1} parent=5 // pred_fallthru
      _
    %p3295 = scmp.le.s32.totalorder 2, %s13
    // Predicated region
    $region53: #{up_forward.1} parent=5 // pred_check
      %p3296 = pneg %p3295
    $region54: #{up_forward.1} parent=5 // pred_check_branch
      %3298 = sbr.rel (%p3296) target = $region56
    $region55: #{up_forward.1} parent=5 // pred_region
      %s3299 = ssub.s32 %s13, 2
      // Predicated region
      $region57: #{up_forward.1} parent=55 // pred_check
        %p3300 = pneg %p194
      $region58: #{up_forward.1} parent=55 // pred_check_branch
        %3302 = sbr.rel (%p3300) target = $region60
      $region59: #{up_forward.1} parent=55 // pred_region
        %p3303 = scmp.lt.s32.totalorder %s19, 1
        %s3304 = scalar_select %p3303, %s19, 1
        %s3305 = smul.addr %s3304, 4
        %s3306 = smul.addr %s3305, 4
        %s3307 = scalar_lea.vmem %s7, %s3306
      $region60: #{up_forward.1} parent=55 // pred_fallthru
        _
    $region56: #{up_forward.1} parent=5 // pred_fallthru
      _
  $region6: #{up_forward.1} parent=0 // loop_footer
    %s17 = sadd.s32 1, %s13
  $region7: #{up_forward.1} parent=0 // loop_footer_branch
    %12 = sbr.rel target = $region3
  $region8: #{up_forward.1} parent=0 // loop_exit
    _

</llo_original>
